<compile_context>
chip_gen: v7x
topology: tpu7x:2x2x1
jax: 0.10.0
libtpu: 0.0.40
codegen_flags: <defaults>
</compile_context>

<pallas_src>
import functools

import numpy as np
import jax
import jax.numpy as jnp
from jax import lax
from jax.experimental import pallas as pl
from jax.experimental.pallas import tpu as pltpu


def _spatial_encoding_kernel(emb_ref, adj_ref, out_ref, *, max_distance: int):
    """emb_ref: SMEM (max_distance,) f32   distance embedding table
       adj_ref: VMEM (Np, Np)       bf16   A + I (resident, constant index_map)
       out_ref: VMEM (TM, Np)       f32    output row block
    """
    TM, Np = out_ref.shape

    i = pl.program_id(0)
    row0 = pl.multiple_of(i * TM, TM)
    row_ids = row0 + lax.broadcasted_iota(jnp.int32, (TM, Np), 0)
    col_ids = lax.broadcasted_iota(jnp.int32, (TM, Np), 1)

    # t = 0: every node reaches itself.
    reach_prev = row_ids == col_ids
    out = jnp.where(reach_prev, emb_ref[0], jnp.float32(0.0))

    if max_distance > 1:
        # t = 1: direct edges = this block's rows of (A + I); no matmul needed.
        reach = adj_ref[pl.ds(row0, TM), :] > 0
        out = jnp.where(reach & jnp.logical_not(reach_prev), emb_ref[1], out)
        reach_prev = reach
        r = reach.astype(jnp.bfloat16)

        # t = 2 .. max_distance-1: one bf16 MXU matmul per extra hop.
        # Operands are re-binarized each hop, so counts <= Np are exact in f32.
        for t in range(2, max_distance):
            counts = jnp.dot(r, adj_ref[...], preferred_element_type=jnp.float32)
            reach = counts > 0.0
            out = jnp.where(reach & jnp.logical_not(reach_prev), emb_ref[t], out)
            reach_prev = reach
            r = reach.astype(jnp.bfloat16)

    # TODO(synk): pairs with shortest distance >= max_distance (incl. disconnected)
    # get 0.0 here; the torch reference hits int64-cast-of-inf / OOB-index UB for
    # those, so only "connected with distance < max_distance" is well-defined.
    out_ref[...] = out


def spatial_encoding(x, edge_index, distance_emb, max_distance: int):
    """JAX/Pallas equivalent of SpatialEncoding.forward(x, edge_index)."""
    N = x.shape[0]

    # Pad node count to a multiple of 256 so TM=256 feeds the full 256-wide MXU.
    # Padded nodes only have self loops, never contaminate real rows/columns, and
    # are sliced away at the end.
    Np = max(256, ((N + 255) // 256) * 256)
    # If the grid would only have one 256-row step, use TM=128 so the "parallel"
    # axis has 2 steps and both v7x TensorCores get work.
    TM = 256 if Np // 256 >= 2 else 128
    grid = (Np // TM,)

    # ---- build A + I once in the wrapper (bf16, 0/1 entries) -----------------------
    src = edge_index[0].astype(jnp.int32)
    dst = edge_index[1].astype(jnp.int32)
    adj = jnp.zeros((Np, Np), jnp.bfloat16)
    adj = adj.at[src, dst].set(jnp.bfloat16(1.0))          # OOB indices are dropped
    diag = jnp.arange(Np)
    adj = adj.at[diag, diag].set(jnp.bfloat16(1.0))        # self loops (reach_0)

    # ---- VMEM budget: resident adjacency (conservatively x2 for pipeline buffers)
    #      + double-buffered output block + headroom for Mosaic internal scratch.
    adj_bytes = 2 * Np * Np                                 # bf16
    out_buf_bytes = 2 * TM * Np * 4                         # double-buffered f32 block
    vmem_limit = min(2 * adj_bytes + out_buf_bytes + (8 << 20), 100 * 1024 * 1024)

    kernel = functools.partial(_spatial_encoding_kernel, max_distance=max_distance)

    out_padded = pl.pallas_call(
        kernel,
        out_shape=jax.ShapeDtypeStruct((Np, Np), jnp.float32),
        grid=grid,
        in_specs=[
            pl.BlockSpec(memory_space=pltpu.MemorySpace.SMEM),    # distance_emb (D,) f32
            pl.BlockSpec((Np, Np), lambda i: (0, 0)),             # A + I, VMEM-resident
        ],
        out_specs=pl.BlockSpec((TM, Np), lambda i: (i, 0)),
        compiler_params=pltpu.CompilerParams(
            dimension_semantics=("parallel",),
            vmem_limit_bytes=vmem_limit,
        ),
    )(distance_emb.astype(jnp.float32), adj)

    return out_padded[:N, :N]


if __name__ == "__main__":
    key = jax.random.PRNGKey(0)
    k_emb, k_x = jax.random.split(key)

    N, F = 8, 4
    max_distance = 8

    # Deterministic param init (matches nn.Parameter(torch.randn(max_distance)) shape).
    distance_emb = jax.random.normal(k_emb, (max_distance,), dtype=jnp.float32)
    # Node features (only shape[0] is used by the module, as in the torch code).
    x = jax.random.normal(k_x, (N, F), dtype=jnp.float32)

    # Undirected ring graph i <-> (i+1) % N (edge_index already symmetrized, mirroring
    # the to_undirected() call in the reference).
    src = np.arange(N)
    dst = (src + 1) % N
    edge_index = jnp.asarray(
        np.stack([np.concatenate([src, dst]), np.concatenate([dst, src])]),
        dtype=jnp.int32,
    )

    out = spatial_encoding(x, edge_index, distance_emb, max_distance)
    out = jax.block_until_ready(out)

    # Pure-numpy reference: Floyd-Warshall hop counts + embedding gather.
    adj = np.full((N, N), 1e9, dtype=np.float64)
    adj[np.asarray(edge_index[0]), np.asarray(edge_index[1])] = 1.0
    np.fill_diagonal(adj, 0.0)
    for k in range(N):
        adj = np.minimum(adj, adj[:, k : k + 1] + adj[k : k + 1, :])
    ref = np.asarray(distance_emb)[adj.astype(np.int64)]

    assert out.shape == (N, N)
    assert np.allclose(np.asarray(out), ref, atol=1e-6), "mismatch vs numpy reference"
    print("KERNEL_OK")
</pallas_src>

<mosaic_0001>
module attributes {stable_mosaic.version = 11 : i64} {
  func.func @_spatial_encoding_kernel(%arg0: i32, %arg1: memref<8xf32, #tpu.memory_space<smem>>, %arg2: memref<256x256xbf16, #tpu.memory_space<vmem>>, %arg3: memref<128x256xf32, #tpu.memory_space<vmem>>) attributes {dimension_semantics = [#tpu.dimension_semantics<parallel>], iteration_bounds = array<i64: 2>, scalar_prefetch = 0 : i64, scratch_operands = 0 : i64, tpu.core_type = #tpu.core_type<tc>, window_params = [{transform_indices = @transform_0, window_bounds = array<i64: 8>}, {pipeline_mode = #tpu.pipeline_mode<synchronous>, transform_indices = @transform_1, window_bounds = array<i64: 256, 256>}, {transform_indices = @transform_2, window_bounds = array<i64: 128, 256>}]} {
    %c128_i32 = arith.constant 128 : i32
    %0 = arith.muli %arg0, %c128_i32 : i32
    %1 = tpu.assume_multiple %0, 128 : i32
    %2 = tpu.iota {dimensions = array<i32: 0>} : vector<128x256xi32>
    %3 = vector.broadcast %1 : i32 to vector<128x256xi32>
    %4 = arith.addi %3, %2 : vector<128x256xi32>
    %5 = tpu.iota {dimensions = array<i32: 1>} : vector<128x256xi32>
    %6 = arith.cmpi eq, %4, %5 : vector<128x256xi32>
    %c0 = arith.constant 0 : index
    %7 = memref.load %arg1[%c0] : memref<8xf32, #tpu.memory_space<smem>>
    %cst = arith.constant 0.000000e+00 : f32
    %8 = vector.broadcast %7 : f32 to vector<128x256xf32>
    %9 = vector.broadcast %cst : f32 to vector<128x256xf32>
    %10 = arith.select %6, %8, %9 : vector<128x256xi1>, vector<128x256xf32>
    %11 = arith.index_cast %1 : i32 to index
    %c0_0 = arith.constant 0 : index
    %12 = vector.load %arg2[%11, %c0_0] : memref<256x256xbf16, #tpu.memory_space<vmem>>, vector<128x256xbf16>
    %cst_1 = arith.constant 0.000000e+00 : bf16
    %13 = vector.broadcast %cst_1 : bf16 to vector<128x256xbf16>
    %14 = arith.cmpf ogt, %12, %13 : vector<128x256xbf16>
    %cst_2 = arith.constant dense<true> : vector<128x256xi1>
    %15 = arith.xori %6, %cst_2 : vector<128x256xi1>
    %16 = arith.andi %14, %15 : vector<128x256xi1>
    %c1 = arith.constant 1 : index
    %17 = memref.load %arg1[%c1] : memref<8xf32, #tpu.memory_space<smem>>
    %18 = vector.broadcast %17 : f32 to vector<128x256xf32>
    %19 = arith.select %16, %18, %10 : vector<128x256xi1>, vector<128x256xf32>
    %20 = arith.extui %14 : vector<128x256xi1> to vector<128x256xi32>
    %21 = arith.sitofp %20 : vector<128x256xi32> to vector<128x256xf32>
    %22 = arith.truncf %21 : vector<128x256xf32> to vector<128x256xbf16>
    %c0_3 = arith.constant 0 : index
    %c0_4 = arith.constant 0 : index
    %23 = vector.load %arg2[%c0_3, %c0_4] : memref<256x256xbf16, #tpu.memory_space<vmem>>, vector<256x256xbf16>
    %cst_5 = arith.constant dense<0.000000e+00> : vector<128x256xf32>
    %24 = tpu.matmul %22, %23, %cst_5 {dimension_numbers = #tpu.dot_dimension_numbers<[1], [0], [0], [1], [0, 0, 1, 1], [], []>} : vector<128x256xbf16>, vector<256x256xbf16>, vector<128x256xf32> -> vector<128x256xf32>
    %cst_6 = arith.constant 0.000000e+00 : f32
    %25 = vector.broadcast %cst_6 : f32 to vector<128x256xf32>
    %26 = arith.cmpf ogt, %24, %25 : vector<128x256xf32>
    %cst_7 = arith.constant dense<true> : vector<128x256xi1>
    %27 = arith.xori %14, %cst_7 : vector<128x256xi1>
    %28 = arith.andi %26, %27 : vector<128x256xi1>
    %c2 = arith.constant 2 : index
    %29 = memref.load %arg1[%c2] : memref<8xf32, #tpu.memory_space<smem>>
    %30 = vector.broadcast %29 : f32 to vector<128x256xf32>
    %31 = arith.select %28, %30, %19 : vector<128x256xi1>, vector<128x256xf32>
    %32 = arith.extui %26 : vector<128x256xi1> to vector<128x256xi32>
    %33 = arith.sitofp %32 : vector<128x256xi32> to vector<128x256xf32>
    %34 = arith.truncf %33 : vector<128x256xf32> to vector<128x256xbf16>
    %c0_8 = arith.constant 0 : index
    %c0_9 = arith.constant 0 : index
    %35 = vector.load %arg2[%c0_8, %c0_9] : memref<256x256xbf16, #tpu.memory_space<vmem>>, vector<256x256xbf16>
    %cst_10 = arith.constant dense<0.000000e+00> : vector<128x256xf32>
    %36 = tpu.matmul %34, %35, %cst_10 {dimension_numbers = #tpu.dot_dimension_numbers<[1], [0], [0], [1], [0, 0, 1, 1], [], []>} : vector<128x256xbf16>, vector<256x256xbf16>, vector<128x256xf32> -> vector<128x256xf32>
    %cst_11 = arith.constant 0.000000e+00 : f32
    %37 = vector.broadcast %cst_11 : f32 to vector<128x256xf32>
    %38 = arith.cmpf ogt, %36, %37 : vector<128x256xf32>
    %cst_12 = arith.constant dense<true> : vector<128x256xi1>
    %39 = arith.xori %26, %cst_12 : vector<128x256xi1>
    %40 = arith.andi %38, %39 : vector<128x256xi1>
    %c3 = arith.constant 3 : index
    %41 = memref.load %arg1[%c3] : memref<8xf32, #tpu.memory_space<smem>>
    %42 = vector.broadcast %41 : f32 to vector<128x256xf32>
    %43 = arith.select %40, %42, %31 : vector<128x256xi1>, vector<128x256xf32>
    %44 = arith.extui %38 : vector<128x256xi1> to vector<128x256xi32>
    %45 = arith.sitofp %44 : vector<128x256xi32> to vector<128x256xf32>
    %46 = arith.truncf %45 : vector<128x256xf32> to vector<128x256xbf16>
    %c0_13 = arith.constant 0 : index
    %c0_14 = arith.constant 0 : index
    %47 = vector.load %arg2[%c0_13, %c0_14] : memref<256x256xbf16, #tpu.memory_space<vmem>>, vector<256x256xbf16>
    %cst_15 = arith.constant dense<0.000000e+00> : vector<128x256xf32>
    %48 = tpu.matmul %46, %47, %cst_15 {dimension_numbers = #tpu.dot_dimension_numbers<[1], [0], [0], [1], [0, 0, 1, 1], [], []>} : vector<128x256xbf16>, vector<256x256xbf16>, vector<128x256xf32> -> vector<128x256xf32>
    %cst_16 = arith.constant 0.000000e+00 : f32
    %49 = vector.broadcast %cst_16 : f32 to vector<128x256xf32>
    %50 = arith.cmpf ogt, %48, %49 : vector<128x256xf32>
    %cst_17 = arith.constant dense<true> : vector<128x256xi1>
    %51 = arith.xori %38, %cst_17 : vector<128x256xi1>
    %52 = arith.andi %50, %51 : vector<128x256xi1>
    %c4 = arith.constant 4 : index
    %53 = memref.load %arg1[%c4] : memref<8xf32, #tpu.memory_space<smem>>
    %54 = vector.broadcast %53 : f32 to vector<128x256xf32>
    %55 = arith.select %52, %54, %43 : vector<128x256xi1>, vector<128x256xf32>
    %56 = arith.extui %50 : vector<128x256xi1> to vector<128x256xi32>
    %57 = arith.sitofp %56 : vector<128x256xi32> to vector<128x256xf32>
    %58 = arith.truncf %57 : vector<128x256xf32> to vector<128x256xbf16>
    %c0_18 = arith.constant 0 : index
    %c0_19 = arith.constant 0 : index
    %59 = vector.load %arg2[%c0_18, %c0_19] : memref<256x256xbf16, #tpu.memory_space<vmem>>, vector<256x256xbf16>
    %cst_20 = arith.constant dense<0.000000e+00> : vector<128x256xf32>
    %60 = tpu.matmul %58, %59, %cst_20 {dimension_numbers = #tpu.dot_dimension_numbers<[1], [0], [0], [1], [0, 0, 1, 1], [], []>} : vector<128x256xbf16>, vector<256x256xbf16>, vector<128x256xf32> -> vector<128x256xf32>
    %cst_21 = arith.constant 0.000000e+00 : f32
    %61 = vector.broadcast %cst_21 : f32 to vector<128x256xf32>
    %62 = arith.cmpf ogt, %60, %61 : vector<128x256xf32>
    %cst_22 = arith.constant dense<true> : vector<128x256xi1>
    %63 = arith.xori %50, %cst_22 : vector<128x256xi1>
    %64 = arith.andi %62, %63 : vector<128x256xi1>
    %c5 = arith.constant 5 : index
    %65 = memref.load %arg1[%c5] : memref<8xf32, #tpu.memory_space<smem>>
    %66 = vector.broadcast %65 : f32 to vector<128x256xf32>
    %67 = arith.select %64, %66, %55 : vector<128x256xi1>, vector<128x256xf32>
    %68 = arith.extui %62 : vector<128x256xi1> to vector<128x256xi32>
    %69 = arith.sitofp %68 : vector<128x256xi32> to vector<128x256xf32>
    %70 = arith.truncf %69 : vector<128x256xf32> to vector<128x256xbf16>
    %c0_23 = arith.constant 0 : index
    %c0_24 = arith.constant 0 : index
    %71 = vector.load %arg2[%c0_23, %c0_24] : memref<256x256xbf16, #tpu.memory_space<vmem>>, vector<256x256xbf16>
    %cst_25 = arith.constant dense<0.000000e+00> : vector<128x256xf32>
    %72 = tpu.matmul %70, %71, %cst_25 {dimension_numbers = #tpu.dot_dimension_numbers<[1], [0], [0], [1], [0, 0, 1, 1], [], []>} : vector<128x256xbf16>, vector<256x256xbf16>, vector<128x256xf32> -> vector<128x256xf32>
    %cst_26 = arith.constant 0.000000e+00 : f32
    %73 = vector.broadcast %cst_26 : f32 to vector<128x256xf32>
    %74 = arith.cmpf ogt, %72, %73 : vector<128x256xf32>
    %cst_27 = arith.constant dense<true> : vector<128x256xi1>
    %75 = arith.xori %62, %cst_27 : vector<128x256xi1>
    %76 = arith.andi %74, %75 : vector<128x256xi1>
    %c6 = arith.constant 6 : index
    %77 = memref.load %arg1[%c6] : memref<8xf32, #tpu.memory_space<smem>>
    %78 = vector.broadcast %77 : f32 to vector<128x256xf32>
    %79 = arith.select %76, %78, %67 : vector<128x256xi1>, vector<128x256xf32>
    %80 = arith.extui %74 : vector<128x256xi1> to vector<128x256xi32>
    %81 = arith.sitofp %80 : vector<128x256xi32> to vector<128x256xf32>
    %82 = arith.truncf %81 : vector<128x256xf32> to vector<128x256xbf16>
    %c0_28 = arith.constant 0 : index
    %c0_29 = arith.constant 0 : index
    %83 = vector.load %arg2[%c0_28, %c0_29] : memref<256x256xbf16, #tpu.memory_space<vmem>>, vector<256x256xbf16>
    %cst_30 = arith.constant dense<0.000000e+00> : vector<128x256xf32>
    %84 = tpu.matmul %82, %83, %cst_30 {dimension_numbers = #tpu.dot_dimension_numbers<[1], [0], [0], [1], [0, 0, 1, 1], [], []>} : vector<128x256xbf16>, vector<256x256xbf16>, vector<128x256xf32> -> vector<128x256xf32>
    %cst_31 = arith.constant 0.000000e+00 : f32
    %85 = vector.broadcast %cst_31 : f32 to vector<128x256xf32>
    %86 = arith.cmpf ogt, %84, %85 : vector<128x256xf32>
    %cst_32 = arith.constant dense<true> : vector<128x256xi1>
    %87 = arith.xori %74, %cst_32 : vector<128x256xi1>
    %88 = arith.andi %86, %87 : vector<128x256xi1>
    %c7 = arith.constant 7 : index
    %89 = memref.load %arg1[%c7] : memref<8xf32, #tpu.memory_space<smem>>
    %90 = vector.broadcast %89 : f32 to vector<128x256xf32>
    %91 = arith.select %88, %90, %79 : vector<128x256xi1>, vector<128x256xf32>
    %c0_33 = arith.constant 0 : index
    %c0_34 = arith.constant 0 : index
    %92 = vector.load %arg3[%c0_33, %c0_34] : memref<128x256xf32, #tpu.memory_space<vmem>>, vector<128x256xf32>
    tpu.vector_store %arg3[%c0_33, %c0_34], %91 {strides = array<i32>} : memref<128x256xf32, #tpu.memory_space<vmem>>, vector<128x256xf32>,
    return
  }
  func.func @transform_0(%arg0: i32) -> i32 {
    %c0_i32 = arith.constant 0 : i32
    %c0_i32_0 = arith.constant 0 : i32
    return %c0_i32 : i32
  }
  func.func @transform_1(%arg0: i32) -> (i32, i32) {
    %c0_i32 = arith.constant 0 : i32
    %c0_i32_0 = arith.constant 0 : i32
    %c0_i32_1 = arith.constant 0 : i32
    return %c0_i32, %c0_i32_0 : i32, i32
  }
  func.func @transform_2(%arg0: i32) -> (i32, i32) {
    %c0_i32 = arith.constant 0 : i32
    %c0_i32_0 = arith.constant 0 : i32
    return %arg0, %c0_i32 : i32, i32
  }
}

</mosaic_0001>

<llo_original>
// kernel: tpu_custom_call.1
$region0: #{tpu_custom_call.1}
  #allocation0 [shape = 'u32[]', space=smem, size = 0x4, offset = 0x4, fixed_abs, tag = 'smem constant byte address 0x4 - core index']
  #allocation1 [shape = 'u32[144,128]{1,0:T(1,128)}', space=vmem, size = 0x12000, scoped, tag = 'internal scratch']
  %s0 = inlined_call_operand.hbm [shape: f32[8], index: 0, kind: input, shape index: {}]
  %s1 = inlined_call_operand.hbm [shape: bf16[256,256], index: 1, kind: input, shape index: {}]
  %s2 = inlined_call_operand.hbm [shape: f32[256,256], index: 2, kind: output, shape index: {}]
  %s3 = sld [smem:[#allocation0]]
  $region49: #{tpu_custom_call.1} parent=0
    _
  %s5 = ssub.s32 1, %s3
  %s6 = scalar_select 0, %s5, %s3
  $region1: #{tpu_custom_call.1} parent=0
    #allocation2 [shape = 'u8[512]{0}', space=smem, size = 0x200, scoped, tag = 'input window, operand 0, single buffered']
    #allocation3 [shape = 's32[2]{0}', space=sflag, size = 0x8, scoped, tag = 'scoped memory for tpu_custom_call.1']
    #allocation4 [shape = 's32[2]{0}', space=sflag, size = 0x8, scoped, tag = 'scoped memory for tpu_custom_call.1']
    #allocation5 [shape = 's32[2]{0}', space=sflag, size = 0x8, scoped, tag = 'scoped memory for tpu_custom_call.1']
    #allocation6 [shape = 'u8[131072]{0}', space=vmem, size = 0x20000, scoped, tag = 'input window, operand 1, single buffered']
    #allocation7 [shape = 'u8[262144]{0}', space=vmem, size = 0x40000, scoped, tag = 'output window, operand 0']
    %7 = vsyncpa [#allocation5], 0
    %8 = vsyncpa [#allocation3], 0
    %9 = vsyncpa [#allocation4], 0
    %s10 = scalar_lea.sflag [#allocation4], 1
    %11 = vsyncpa %s10, 0
    loop: start=0, step=1, limit=4
    $region2: #{tpu_custom_call.1} parent=1 // loop_pre_header
      _
    $region3: #{tpu_custom_call.1} parent=1 // loop_header
      %s13 = sphi 0, %s17
      %p14 = scmp.ge.s32.totalorder %s13, 4
      %s21 = sphi 0, %s21
      %s23 = sphi 0, %s21
      %s24 = sphi 0, %s23
      %s38 = sphi 0, %s24
      %s42 = sphi 0, %s42
      %s44 = sphi 0, %s42
      %s45 = sphi 0, %s44
      %s59 = sphi 0, %s45
      %s65 = sphi 0, %s67
      %s68 = sphi 0, %s65
      %s69 = sphi 0, %s68
      %s85 = sphi 0, %s69
    $region4: #{tpu_custom_call.1} parent=1 // loop_header_branch
      %16 = sbr.rel (%p14) target = $region8
    $region5: #{tpu_custom_call.1} parent=1 // loop_body
      %s18 = ssub.s32 %s13, 1
      %s19 = ssub.s32 %s13, 2
      %s20 = sadd.s32 %s13, 1
      %s22 = sadd.s32 %s21, 1
      %p25 = scmp.eq.s32.totalorder %s13, 1
      %p26 = scmp.ne.s32.totalorder %s21, %s23
      %p27 = scmp.eq.s32.totalorder %s13, 0
      %p28 = por %p26, %p27
      %p29 = scmp.ne.s32.totalorder %s21, %s23
      %p30 = scmp.eq.s32.totalorder %s18, 1
      %p31 = por %p29, %p30
      %p32 = scmp.ne.s32.totalorder %s23, %s24
      %p33 = scmp.eq.s32.totalorder %s18, 0
      %p34 = por %p32, %p33
      %p35 = scmp.ne.s32.totalorder %s23, %s24
      %p36 = scmp.eq.s32.totalorder %s19, 1
      %p37 = por %p35, %p36
      %p39 = scmp.ne.s32.totalorder %s24, %s38
      %p40 = scmp.eq.s32.totalorder %s19, 0
      %p41 = por %p39, %p40
      %s43 = sadd.s32 %s42, 1
      %p46 = scmp.eq.s32.totalorder %s13, 1
      %p47 = scmp.ne.s32.totalorder %s42, %s44
      %p48 = scmp.eq.s32.totalorder %s13, 0
      %p49 = por %p47, %p48
      %p50 = scmp.ne.s32.totalorder %s42, %s44
      %p51 = scmp.eq.s32.totalorder %s18, 1
      %p52 = por %p50, %p51
      %p53 = scmp.ne.s32.totalorder %s44, %s45
      %p54 = scmp.eq.s32.totalorder %s18, 0
      %p55 = por %p53, %p54
      %p56 = scmp.ne.s32.totalorder %s44, %s45
      %p57 = scmp.eq.s32.totalorder %s19, 1
      %p58 = por %p56, %p57
      %p60 = scmp.ne.s32.totalorder %s45, %s59
      %p61 = scmp.eq.s32.totalorder %s19, 0
      %p62 = por %p60, %p61
      %s63 = ssub.s32 %s13, %s20
      %p64 = scmp.eq.s32.totalorder %s63, 0
      %s66 = sadd.s32 %s65, 1
      %s67 = scalar_select %p64, %s65, %s66
      %p70 = pneg %p64
      %p71 = scmp.eq.s32.totalorder %s13, 1
      %p72 = por %p70, %p71
      %p73 = scmp.ne.s32.totalorder %s65, %s68
      %p74 = scmp.eq.s32.totalorder %s13, 0
      %p75 = por %p73, %p74
      %p76 = scmp.ne.s32.totalorder %s65, %s68
      %p77 = scmp.eq.s32.totalorder %s18, 1
      %p78 = por %p76, %p77
      %p79 = scmp.ne.s32.totalorder %s68, %s69
      %p80 = scmp.eq.s32.totalorder %s18, 0
      %p81 = por %p79, %p80
      %p82 = scmp.ne.s32.totalorder %s68, %s69
      %p83 = scmp.eq.s32.totalorder %s19, 1
      %p84 = por %p82, %p83
      %p86 = scmp.ne.s32.totalorder %s69, %s85
      %p87 = scmp.eq.s32.totalorder %s19, 0
      %p88 = por %p86, %p87
      %p89 = scmp.le.s32.totalorder 1, %s13
      %p90 = scmp.lt.s32.totalorder %s13, 3
      %p91 = pnand %p89, %p90
      %p92 = pneg %p91
      // Predicated region
      $region9: #{tpu_custom_call.1} parent=5 // pred_check
        _
      $region10: #{tpu_custom_call.1} parent=5 // pred_check_branch
        %94 = sbr.rel (%p91) target = $region12
      $region11: #{tpu_custom_call.1} parent=5 // pred_region
        %s95 = ssub.s32 %s13, 1
        // Predicated region
        $region13: #{tpu_custom_call.1} parent=11 // pred_check
          %p96 = pneg %p34
        $region14: #{tpu_custom_call.1} parent=11 // pred_check_branch
          %98 = sbr.rel (%p96) target = $region16
        $region15: #{tpu_custom_call.1} parent=11 // pred_region
          %s100 = ssub.s32 16, 16
          %101 = vsyncadd [#allocation5], %s100
          %104 = dma.hbm_to_smem %s0, 16, [#allocation2], [#allocation5]
        $region16: #{tpu_custom_call.1} parent=11 // pred_fallthru
          _
        // Predicated region
        $region17: #{tpu_custom_call.1} parent=11 // pred_check
          %p105 = pneg %p55
        $region18: #{tpu_custom_call.1} parent=11 // pred_check_branch
          %107 = sbr.rel (%p105) target = $region20
        $region19: #{tpu_custom_call.1} parent=11 // pred_region
          %s109 = ssub.s32 4096, 4096
          %110 = vsyncadd [#allocation3], %s109
          %s111 = sshll.u32 [#allocation6], 4
          %s112 = int_to_ptr.vmem [resolvable:$true] %s111
          %117 = dma.hbm_to_vmem [thread:$0]  %s1, 4096, %s112, [#allocation3], 128, 128, 8
        $region20: #{tpu_custom_call.1} parent=11 // pred_fallthru
          _
      $region12: #{tpu_custom_call.1} parent=5 // pred_fallthru
        _
      %p118 = scmp.lt.s32.totalorder %s13, 2
      // Predicated region
      $region21: #{tpu_custom_call.1} parent=5 // pred_check
        %p119 = pneg %p118
      $region22: #{tpu_custom_call.1} parent=5 // pred_check_branch
        %121 = sbr.rel (%p119) target = $region24
      $region23: #{tpu_custom_call.1} parent=5 // pred_region
        _
      $region24: #{tpu_custom_call.1} parent=5 // pred_fallthru
        _
      %p122 = scmp.le.s32.totalorder 1, %s13
      %p123 = scmp.lt.s32.totalorder %s13, 3
      %p124 = pnand %p122, %p123
      %p125 = pneg %p124
      // Predicated region
      $region25: #{tpu_custom_call.1} parent=5 // pred_check
        _
      $region26: #{tpu_custom_call.1} parent=5 // pred_check_branch
        %127 = sbr.rel (%p124) target = $region28
      $region27: #{tpu_custom_call.1} parent=5 // pred_region
        %s128 = ssub.s32 %s13, 1
        // Predicated region
        $region29: #{tpu_custom_call.1} parent=27 // pred_check
          %p129 = pneg %p34
        $region30: #{tpu_custom_call.1} parent=27 // pred_check_branch
          %131 = sbr.rel (%p129) target = $region32
        $region31: #{tpu_custom_call.1} parent=27 // pred_region
          %132 = dma.done [#allocation5], 16
        $region32: #{tpu_custom_call.1} parent=27 // pred_fallthru
          _
        // Predicated region
        $region33: #{tpu_custom_call.1} parent=27 // pred_check
          %p133 = pneg %p55
        $region34: #{tpu_custom_call.1} parent=27 // pred_check_branch
          %135 = sbr.rel (%p133) target = $region36
        $region35: #{tpu_custom_call.1} parent=27 // pred_region
          %136 = dma.done [#allocation3], 4096
        $region36: #{tpu_custom_call.1} parent=27 // pred_fallthru
          _
        %137 = sfence
        %p138 = pneg %p34
        %p139 = pneg %p31
        %p140 = pneg %p55
        %p141 = pneg %p52
        %p142 = pneg %p81
        %p143 = pneg %p78
        %s144 = sand.u32 %s68, 1
        %s145 = scalar_lea.sflag [#allocation4], %s144
        %s146 = sand.u32 %s68, 1
        %s147 = smul.addr %s146, 256
        %s148 = scalar_lea.vmem [#allocation7], %s147
        %s149 = smul.u32 16, %s18
        %s153 = smul.u32 %s18, 128
        %v154 = vlaneseq
        %v155 = vshrl.u32 %v154, 7
        %v156 = vadd.s32 %v155, 8
        %v157 = vadd.s32 %v155, 16
        %v158 = vadd.s32 %v155, 24
        %v159 = vadd.s32 %v155, 32
        %v160 = vadd.s32 %v155, 40
        %v161 = vadd.s32 %v155, 48
        %v162 = vadd.s32 %v155, 56
        %v163 = vadd.s32 %v155, 64
        %v164 = vadd.s32 %v155, 72
        %v165 = vadd.s32 %v155, 80
        %v166 = vadd.s32 %v155, 88
        %v167 = vadd.s32 %v155, 96
        %v168 = vadd.s32 %v155, 104
        %v169 = vadd.s32 %v155, 112
        %v170 = vadd.s32 %v155, 120
        %v171 = vstv %s153
        %v172 = vadd.s32 %v171, %v155
        %v173 = vadd.s32 %v171, %v156
        %v174 = vadd.s32 %v171, %v157
        %v175 = vadd.s32 %v171, %v158
        %v176 = vadd.s32 %v171, %v159
        %v177 = vadd.s32 %v171, %v160
        %v178 = vadd.s32 %v171, %v161
        %v179 = vadd.s32 %v171, %v162
        %v180 = vadd.s32 %v171, %v163
        %v181 = vadd.s32 %v171, %v164
        %v182 = vadd.s32 %v171, %v165
        %v183 = vadd.s32 %v171, %v166
        %v184 = vadd.s32 %v171, %v167
        %v185 = vadd.s32 %v171, %v168
        %v186 = vadd.s32 %v171, %v169
        %v187 = vadd.s32 %v171, %v170
        %v188 = vlaneseq
        %v189 = vand.u32 %v188, 127
        %v190 = vadd.s32 %v189, 128
        %vm191 = vcmp.eq.s32.totalorder %v172, %v189
        %vm192 = vcmp.eq.s32.totalorder %v172, %v190
        %vm193 = vcmp.eq.s32.totalorder %v173, %v189
        %vm194 = vcmp.eq.s32.totalorder %v173, %v190
        %vm195 = vcmp.eq.s32.totalorder %v174, %v189
        %vm196 = vcmp.eq.s32.totalorder %v174, %v190
        %vm197 = vcmp.eq.s32.totalorder %v175, %v189
        %vm198 = vcmp.eq.s32.totalorder %v175, %v190
        %vm199 = vcmp.eq.s32.totalorder %v176, %v189
        %vm200 = vcmp.eq.s32.totalorder %v176, %v190
        %vm201 = vcmp.eq.s32.totalorder %v177, %v189
        %vm202 = vcmp.eq.s32.totalorder %v177, %v190
        %vm203 = vcmp.eq.s32.totalorder %v178, %v189
        %vm204 = vcmp.eq.s32.totalorder %v178, %v190
        %vm205 = vcmp.eq.s32.totalorder %v179, %v189
        %vm206 = vcmp.eq.s32.totalorder %v179, %v190
        %vm207 = vcmp.eq.s32.totalorder %v180, %v189
        %vm208 = vcmp.eq.s32.totalorder %v180, %v190
        %vm209 = vcmp.eq.s32.totalorder %v181, %v189
        %vm210 = vcmp.eq.s32.totalorder %v181, %v190
        %vm211 = vcmp.eq.s32.totalorder %v182, %v189
        %vm212 = vcmp.eq.s32.totalorder %v182, %v190
        %vm213 = vcmp.eq.s32.totalorder %v183, %v189
        %vm214 = vcmp.eq.s32.totalorder %v183, %v190
        %vm215 = vcmp.eq.s32.totalorder %v184, %v189
        %vm216 = vcmp.eq.s32.totalorder %v184, %v190
        %vm217 = vcmp.eq.s32.totalorder %v185, %v189
        %vm218 = vcmp.eq.s32.totalorder %v185, %v190
        %vm219 = vcmp.eq.s32.totalorder %v186, %v189
        %vm220 = vcmp.eq.s32.totalorder %v186, %v190
        %vm221 = vcmp.eq.s32.totalorder %v187, %v189
        %vm222 = vcmp.eq.s32.totalorder %v187, %v190
        %s223 = sld [smem:[#allocation2]]
        %v224 = vstv %s223
        %v225 = vsel %vm191, %v224, 0.0
        %v226 = vsel %vm192, %v224, 0.0
        %v227 = vsel %vm193, %v224, 0.0
        %v228 = vsel %vm194, %v224, 0.0
        %v229 = vsel %vm195, %v224, 0.0
        %v230 = vsel %vm196, %v224, 0.0
        %v231 = vsel %vm197, %v224, 0.0
        %v232 = vsel %vm198, %v224, 0.0
        %v233 = vsel %vm199, %v224, 0.0
        %v234 = vsel %vm200, %v224, 0.0
        %v235 = vsel %vm201, %v224, 0.0
        %v236 = vsel %vm202, %v224, 0.0
        %v237 = vsel %vm203, %v224, 0.0
        %v238 = vsel %vm204, %v224, 0.0
        %v239 = vsel %vm205, %v224, 0.0
        %v240 = vsel %vm206, %v224, 0.0
        %v241 = vsel %vm207, %v224, 0.0
        %v242 = vsel %vm208, %v224, 0.0
        %v243 = vsel %vm209, %v224, 0.0
        %v244 = vsel %vm210, %v224, 0.0
        %v245 = vsel %vm211, %v224, 0.0
        %v246 = vsel %vm212, %v224, 0.0
        %v247 = vsel %vm213, %v224, 0.0
        %v248 = vsel %vm214, %v224, 0.0
        %v249 = vsel %vm215, %v224, 0.0
        %v250 = vsel %vm216, %v224, 0.0
        %v251 = vsel %vm217, %v224, 0.0
        %v252 = vsel %vm218, %v224, 0.0
        %v253 = vsel %vm219, %v224, 0.0
        %v254 = vsel %vm220, %v224, 0.0
        %v255 = vsel %vm221, %v224, 0.0
        %v256 = vsel %vm222, %v224, 0.0
        %s257 = sshra.s32 %s153, 3
        %s258 = sand.u32 %s153, 7
        %s259 = smul.u32 %s257, 2
        %s260 = smul.addr %s259, 4
        %s261 = scalar_lea.vmem [#allocation6], %s260
        %v262 = vld [vmem:[%s261] sm:$0xff]
        %v263 = vld [vmem:[%s261 + $0x8] sm:$0xff]
        %v264 = vld [vmem:[%s261 + $0x10] sm:$0xff]
        %v265 = vld [vmem:[%s261 + $0x18] sm:$0xff]
        %v266 = vld [vmem:[%s261 + $0x20] sm:$0xff]
        %v267 = vld [vmem:[%s261 + $0x28] sm:$0xff]
        %v268 = vld [vmem:[%s261 + $0x30] sm:$0xff]
        %v269 = vld [vmem:[%s261 + $0x38] sm:$0xff]
        %v270 = vld [vmem:[%s261 + $0x40] sm:$0xff]
        %v271 = vld [vmem:[%s261 + $0x48] sm:$0xff]
        %v272 = vld [vmem:[%s261 + $0x50] sm:$0xff]
        %v273 = vld [vmem:[%s261 + $0x58] sm:$0xff]
        %v274 = vld [vmem:[%s261 + $0x60] sm:$0xff]
        %v275 = vld [vmem:[%s261 + $0x68] sm:$0xff]
        %v276 = vld [vmem:[%s261 + $0x70] sm:$0xff]
        %v277 = vld [vmem:[%s261 + $0x78] sm:$0xff]
        %vm278 = vcmp.gt.bf16.partialorder %v262, 0
        %vm279 = vcmp.gt.bf16.partialorder %v263, 0
        %vm280 = vcmp.gt.bf16.partialorder %v264, 0
        %vm281 = vcmp.gt.bf16.partialorder %v265, 0
        %vm282 = vcmp.gt.bf16.partialorder %v266, 0
        %vm283 = vcmp.gt.bf16.partialorder %v267, 0
        %vm284 = vcmp.gt.bf16.partialorder %v268, 0
        %vm285 = vcmp.gt.bf16.partialorder %v269, 0
        %vm286 = vcmp.gt.bf16.partialorder %v270, 0
        %vm287 = vcmp.gt.bf16.partialorder %v271, 0
        %vm288 = vcmp.gt.bf16.partialorder %v272, 0
        %vm289 = vcmp.gt.bf16.partialorder %v273, 0
        %vm290 = vcmp.gt.bf16.partialorder %v274, 0
        %vm291 = vcmp.gt.bf16.partialorder %v275, 0
        %vm292 = vcmp.gt.bf16.partialorder %v276, 0
        %vm293 = vcmp.gt.bf16.partialorder %v277, 0
        %vm294 = vmxor %vm191, 1
        %vm295 = vmxor %vm192, 1
        %vm296 = vmxor %vm193, 1
        %vm297 = vmxor %vm194, 1
        %vm298 = vmxor %vm195, 1
        %vm299 = vmxor %vm196, 1
        %vm300 = vmxor %vm197, 1
        %vm301 = vmxor %vm198, 1
        %vm302 = vmxor %vm199, 1
        %vm303 = vmxor %vm200, 1
        %vm304 = vmxor %vm201, 1
        %vm305 = vmxor %vm202, 1
        %vm306 = vmxor %vm203, 1
        %vm307 = vmxor %vm204, 1
        %vm308 = vmxor %vm205, 1
        %vm309 = vmxor %vm206, 1
        %vm310 = vmxor %vm207, 1
        %vm311 = vmxor %vm208, 1
        %vm312 = vmxor %vm209, 1
        %vm313 = vmxor %vm210, 1
        %vm314 = vmxor %vm211, 1
        %vm315 = vmxor %vm212, 1
        %vm316 = vmxor %vm213, 1
        %vm317 = vmxor %vm214, 1
        %vm318 = vmxor %vm215, 1
        %vm319 = vmxor %vm216, 1
        %vm320 = vmxor %vm217, 1
        %vm321 = vmxor %vm218, 1
        %vm322 = vmxor %vm219, 1
        %vm323 = vmxor %vm220, 1
        %vm324 = vmxor %vm221, 1
        %vm325 = vmxor %vm222, 1
        %vm326 = vmpackc.low %vm295, %vm294
        %vm327 = vmpackc.low %vm297, %vm296
        %vm328 = vmpackc.low %vm299, %vm298
        %vm329 = vmpackc.low %vm301, %vm300
        %vm330 = vmpackc.low %vm303, %vm302
        %vm331 = vmpackc.low %vm305, %vm304
        %vm332 = vmpackc.low %vm307, %vm306
        %vm333 = vmpackc.low %vm309, %vm308
        %vm334 = vmpackc.low %vm311, %vm310
        %vm335 = vmpackc.low %vm313, %vm312
        %vm336 = vmpackc.low %vm315, %vm314
        %vm337 = vmpackc.low %vm317, %vm316
        %vm338 = vmpackc.low %vm319, %vm318
        %vm339 = vmpackc.low %vm321, %vm320
        %vm340 = vmpackc.low %vm323, %vm322
        %vm341 = vmpackc.low %vm325, %vm324
        %vm342 = vmand %vm278, %vm326
        %vm343 = vmand %vm279, %vm327
        %vm344 = vmand %vm280, %vm328
        %vm345 = vmand %vm281, %vm329
        %vm346 = vmand %vm282, %vm330
        %vm347 = vmand %vm283, %vm331
        %vm348 = vmand %vm284, %vm332
        %vm349 = vmand %vm285, %vm333
        %vm350 = vmand %vm286, %vm334
        %vm351 = vmand %vm287, %vm335
        %vm352 = vmand %vm288, %vm336
        %vm353 = vmand %vm289, %vm337
        %vm354 = vmand %vm290, %vm338
        %vm355 = vmand %vm291, %vm339
        %vm356 = vmand %vm292, %vm340
        %vm357 = vmand %vm293, %vm341
        %s358 = sld [smem:[#allocation2 + $0x1]]
        %v359 = vstv %s358
        %v360 = vsel %vm342, 65537, 0
        %v361 = vsel %vm343, 65537, 0
        %v362 = vsel %vm344, 65537, 0
        %v363 = vsel %vm345, 65537, 0
        %v364 = vsel %vm346, 65537, 0
        %v365 = vsel %vm347, 65537, 0
        %v366 = vsel %vm348, 65537, 0
        %v367 = vsel %vm349, 65537, 0
        %v368 = vsel %vm350, 65537, 0
        %v369 = vsel %vm351, 65537, 0
        %v370 = vsel %vm352, 65537, 0
        %v371 = vsel %vm353, 65537, 0
        %v372 = vsel %vm354, 65537, 0
        %v373 = vsel %vm355, 65537, 0
        %v374 = vsel %vm356, 65537, 0
        %v375 = vsel %vm357, 65537, 0
        %v376 = vunpack.c.l.b16 %v360
        %v377 = vunpack.c.h.b16 %v360
        %v378 = vunpack.c.l.b16 %v361
        %v379 = vunpack.c.h.b16 %v361
        %v380 = vunpack.c.l.b16 %v362
        %v381 = vunpack.c.h.b16 %v362
        %v382 = vunpack.c.l.b16 %v363
        %v383 = vunpack.c.h.b16 %v363
        %v384 = vunpack.c.l.b16 %v364
        %v385 = vunpack.c.h.b16 %v364
        %v386 = vunpack.c.l.b16 %v365
        %v387 = vunpack.c.h.b16 %v365
        %v388 = vunpack.c.l.b16 %v366
        %v389 = vunpack.c.h.b16 %v366
        %v390 = vunpack.c.l.b16 %v367
        %v391 = vunpack.c.h.b16 %v367
        %v392 = vunpack.c.l.b16 %v368
        %v393 = vunpack.c.h.b16 %v368
        %v394 = vunpack.c.l.b16 %v369
        %v395 = vunpack.c.h.b16 %v369
        %v396 = vunpack.c.l.b16 %v370
        %v397 = vunpack.c.h.b16 %v370
        %v398 = vunpack.c.l.b16 %v371
        %v399 = vunpack.c.h.b16 %v371
        %v400 = vunpack.c.l.b16 %v372
        %v401 = vunpack.c.h.b16 %v372
        %v402 = vunpack.c.l.b16 %v373
        %v403 = vunpack.c.h.b16 %v373
        %v404 = vunpack.c.l.b16 %v374
        %v405 = vunpack.c.h.b16 %v374
        %v406 = vunpack.c.l.b16 %v375
        %v407 = vunpack.c.h.b16 %v375
        %vm408 = vcmp.ne.s32.totalorder %v376, 0
        %vm409 = vcmp.ne.s32.totalorder %v377, 0
        %vm410 = vcmp.ne.s32.totalorder %v378, 0
        %vm411 = vcmp.ne.s32.totalorder %v379, 0
        %vm412 = vcmp.ne.s32.totalorder %v380, 0
        %vm413 = vcmp.ne.s32.totalorder %v381, 0
        %vm414 = vcmp.ne.s32.totalorder %v382, 0
        %vm415 = vcmp.ne.s32.totalorder %v383, 0
        %vm416 = vcmp.ne.s32.totalorder %v384, 0
        %vm417 = vcmp.ne.s32.totalorder %v385, 0
        %vm418 = vcmp.ne.s32.totalorder %v386, 0
        %vm419 = vcmp.ne.s32.totalorder %v387, 0
        %vm420 = vcmp.ne.s32.totalorder %v388, 0
        %vm421 = vcmp.ne.s32.totalorder %v389, 0
        %vm422 = vcmp.ne.s32.totalorder %v390, 0
        %vm423 = vcmp.ne.s32.totalorder %v391, 0
        %vm424 = vcmp.ne.s32.totalorder %v392, 0
        %vm425 = vcmp.ne.s32.totalorder %v393, 0
        %vm426 = vcmp.ne.s32.totalorder %v394, 0
        %vm427 = vcmp.ne.s32.totalorder %v395, 0
        %vm428 = vcmp.ne.s32.totalorder %v396, 0
        %vm429 = vcmp.ne.s32.totalorder %v397, 0
        %vm430 = vcmp.ne.s32.totalorder %v398, 0
        %vm431 = vcmp.ne.s32.totalorder %v399, 0
        %vm432 = vcmp.ne.s32.totalorder %v400, 0
        %vm433 = vcmp.ne.s32.totalorder %v401, 0
        %vm434 = vcmp.ne.s32.totalorder %v402, 0
        %vm435 = vcmp.ne.s32.totalorder %v403, 0
        %vm436 = vcmp.ne.s32.totalorder %v404, 0
        %vm437 = vcmp.ne.s32.totalorder %v405, 0
        %vm438 = vcmp.ne.s32.totalorder %v406, 0
        %vm439 = vcmp.ne.s32.totalorder %v407, 0
        %v440 = vsel %vm408, %v359, %v225
        %v441 = vsel %vm409, %v359, %v226
        %v442 = vsel %vm410, %v359, %v227
        %v443 = vsel %vm411, %v359, %v228
        %v444 = vsel %vm412, %v359, %v229
        %v445 = vsel %vm413, %v359, %v230
        %v446 = vsel %vm414, %v359, %v231
        %v447 = vsel %vm415, %v359, %v232
        %v448 = vsel %vm416, %v359, %v233
        %v449 = vsel %vm417, %v359, %v234
        %v450 = vsel %vm418, %v359, %v235
        %v451 = vsel %vm419, %v359, %v236
        %v452 = vsel %vm420, %v359, %v237
        %v453 = vsel %vm421, %v359, %v238
        %v454 = vsel %vm422, %v359, %v239
        %v455 = vsel %vm423, %v359, %v240
        %v456 = vsel %vm424, %v359, %v241
        %v457 = vsel %vm425, %v359, %v242
        %v458 = vsel %vm426, %v359, %v243
        %v459 = vsel %vm427, %v359, %v244
        %v460 = vsel %vm428, %v359, %v245
        %v461 = vsel %vm429, %v359, %v246
        %v462 = vsel %vm430, %v359, %v247
        %v463 = vsel %vm431, %v359, %v248
        %v464 = vsel %vm432, %v359, %v249
        %v465 = vsel %vm433, %v359, %v250
        %v466 = vsel %vm434, %v359, %v251
        %v467 = vsel %vm435, %v359, %v252
        %v468 = vsel %vm436, %v359, %v253
        %v469 = vsel %vm437, %v359, %v254
        %v470 = vsel %vm438, %v359, %v255
        %v471 = vsel %vm439, %v359, %v256
        %v472 = vsel %vm278, 65537, 0
        %v473 = vsel %vm279, 65537, 0
        %v474 = vsel %vm280, 65537, 0
        %v475 = vsel %vm281, 65537, 0
        %v476 = vsel %vm282, 65537, 0
        %v477 = vsel %vm283, 65537, 0
        %v478 = vsel %vm284, 65537, 0
        %v479 = vsel %vm285, 65537, 0
        %v480 = vsel %vm286, 65537, 0
        %v481 = vsel %vm287, 65537, 0
        %v482 = vsel %vm288, 65537, 0
        %v483 = vsel %vm289, 65537, 0
        %v484 = vsel %vm290, 65537, 0
        %v485 = vsel %vm291, 65537, 0
        %v486 = vsel %vm292, 65537, 0
        %v487 = vsel %vm293, 65537, 0
        %v488 = vunpack.c.l.b16 %v472
        %v489 = vunpack.c.h.b16 %v472
        %v490 = vunpack.c.l.b16 %v473
        %v491 = vunpack.c.h.b16 %v473
        %v492 = vunpack.c.l.b16 %v474
        %v493 = vunpack.c.h.b16 %v474
        %v494 = vunpack.c.l.b16 %v475
        %v495 = vunpack.c.h.b16 %v475
        %v496 = vunpack.c.l.b16 %v476
        %v497 = vunpack.c.h.b16 %v476
        %v498 = vunpack.c.l.b16 %v477
        %v499 = vunpack.c.h.b16 %v477
        %v500 = vunpack.c.l.b16 %v478
        %v501 = vunpack.c.h.b16 %v478
        %v502 = vunpack.c.l.b16 %v479
        %v503 = vunpack.c.h.b16 %v479
        %v504 = vunpack.c.l.b16 %v480
        %v505 = vunpack.c.h.b16 %v480
        %v506 = vunpack.c.l.b16 %v481
        %v507 = vunpack.c.h.b16 %v481
        %v508 = vunpack.c.l.b16 %v482
        %v509 = vunpack.c.h.b16 %v482
        %v510 = vunpack.c.l.b16 %v483
        %v511 = vunpack.c.h.b16 %v483
        %v512 = vunpack.c.l.b16 %v484
        %v513 = vunpack.c.h.b16 %v484
        %v514 = vunpack.c.l.b16 %v485
        %v515 = vunpack.c.h.b16 %v485
        %v516 = vunpack.c.l.b16 %v486
        %v517 = vunpack.c.h.b16 %v486
        %v518 = vunpack.c.l.b16 %v487
        %v519 = vunpack.c.h.b16 %v487
        %vm520 = vcmp.ne.s32.totalorder %v488, 0
        %vm521 = vcmp.ne.s32.totalorder %v489, 0
        %vm522 = vcmp.ne.s32.totalorder %v490, 0
        %vm523 = vcmp.ne.s32.totalorder %v491, 0
        %vm524 = vcmp.ne.s32.totalorder %v492, 0
        %vm525 = vcmp.ne.s32.totalorder %v493, 0
        %vm526 = vcmp.ne.s32.totalorder %v494, 0
        %vm527 = vcmp.ne.s32.totalorder %v495, 0
        %vm528 = vcmp.ne.s32.totalorder %v496, 0
        %vm529 = vcmp.ne.s32.totalorder %v497, 0
        %vm530 = vcmp.ne.s32.totalorder %v498, 0
        %vm531 = vcmp.ne.s32.totalorder %v499, 0
        %vm532 = vcmp.ne.s32.totalorder %v500, 0
        %vm533 = vcmp.ne.s32.totalorder %v501, 0
        %vm534 = vcmp.ne.s32.totalorder %v502, 0
        %vm535 = vcmp.ne.s32.totalorder %v503, 0
        %vm536 = vcmp.ne.s32.totalorder %v504, 0
        %vm537 = vcmp.ne.s32.totalorder %v505, 0
        %vm538 = vcmp.ne.s32.totalorder %v506, 0
        %vm539 = vcmp.ne.s32.totalorder %v507, 0
        %vm540 = vcmp.ne.s32.totalorder %v508, 0
        %vm541 = vcmp.ne.s32.totalorder %v509, 0
        %vm542 = vcmp.ne.s32.totalorder %v510, 0
        %vm543 = vcmp.ne.s32.totalorder %v511, 0
        %vm544 = vcmp.ne.s32.totalorder %v512, 0
        %vm545 = vcmp.ne.s32.totalorder %v513, 0
        %vm546 = vcmp.ne.s32.totalorder %v514, 0
        %vm547 = vcmp.ne.s32.totalorder %v515, 0
        %vm548 = vcmp.ne.s32.totalorder %v516, 0
        %vm549 = vcmp.ne.s32.totalorder %v517, 0
        %vm550 = vcmp.ne.s32.totalorder %v518, 0
        %vm551 = vcmp.ne.s32.totalorder %v519, 0
        %v552 = vsel %vm520, 1, 0
        %v553 = vsel %vm521, 1, 0
        %v554 = vsel %vm522, 1, 0
        %v555 = vsel %vm523, 1, 0
        %v556 = vsel %vm524, 1, 0
        %v557 = vsel %vm525, 1, 0
        %v558 = vsel %vm526, 1, 0
        %v559 = vsel %vm527, 1, 0
        %v560 = vsel %vm528, 1, 0
        %v561 = vsel %vm529, 1, 0
        %v562 = vsel %vm530, 1, 0
        %v563 = vsel %vm531, 1, 0
        %v564 = vsel %vm532, 1, 0
        %v565 = vsel %vm533, 1, 0
        %v566 = vsel %vm534, 1, 0
        %v567 = vsel %vm535, 1, 0
        %v568 = vsel %vm536, 1, 0
        %v569 = vsel %vm537, 1, 0
        %v570 = vsel %vm538, 1, 0
        %v571 = vsel %vm539, 1, 0
        %v572 = vsel %vm540, 1, 0
        %v573 = vsel %vm541, 1, 0
        %v574 = vsel %vm542, 1, 0
        %v575 = vsel %vm543, 1, 0
        %v576 = vsel %vm544, 1, 0
        %v577 = vsel %vm545, 1, 0
        %v578 = vsel %vm546, 1, 0
        %v579 = vsel %vm547, 1, 0
        %v580 = vsel %vm548, 1, 0
        %v581 = vsel %vm549, 1, 0
        %v582 = vsel %vm550, 1, 0
        %v583 = vsel %vm551, 1, 0
        %v584 = vcvt.s32.f32 %v552
        %v585 = vcvt.s32.f32 %v553
        %v586 = vcvt.s32.f32 %v554
        %v587 = vcvt.s32.f32 %v555
        %v588 = vcvt.s32.f32 %v556
        %v589 = vcvt.s32.f32 %v557
        %v590 = vcvt.s32.f32 %v558
        %v591 = vcvt.s32.f32 %v559
        %v592 = vcvt.s32.f32 %v560
        %v593 = vcvt.s32.f32 %v561
        %v594 = vcvt.s32.f32 %v562
        %v595 = vcvt.s32.f32 %v563
        %v596 = vcvt.s32.f32 %v564
        %v597 = vcvt.s32.f32 %v565
        %v598 = vcvt.s32.f32 %v566
        %v599 = vcvt.s32.f32 %v567
        %v600 = vcvt.s32.f32 %v568
        %v601 = vcvt.s32.f32 %v569
        %v602 = vcvt.s32.f32 %v570
        %v603 = vcvt.s32.f32 %v571
        %v604 = vcvt.s32.f32 %v572
        %v605 = vcvt.s32.f32 %v573
        %v606 = vcvt.s32.f32 %v574
        %v607 = vcvt.s32.f32 %v575
        %v608 = vcvt.s32.f32 %v576
        %v609 = vcvt.s32.f32 %v577
        %v610 = vcvt.s32.f32 %v578
        %v611 = vcvt.s32.f32 %v579
        %v612 = vcvt.s32.f32 %v580
        %v613 = vcvt.s32.f32 %v581
        %v614 = vcvt.s32.f32 %v582
        %v615 = vcvt.s32.f32 %v583
        %v616 = vpack.c.bf16 %v586, %v584
        %v617 = vpack.c.bf16 %v587, %v585
        %v618 = vpack.c.bf16 %v590, %v588
        %v619 = vpack.c.bf16 %v591, %v589
        %v620 = vpack.c.bf16 %v594, %v592
        %v621 = vpack.c.bf16 %v595, %v593
        %v622 = vpack.c.bf16 %v598, %v596
        %v623 = vpack.c.bf16 %v599, %v597
        %v624 = vpack.c.bf16 %v602, %v600
        %v625 = vpack.c.bf16 %v603, %v601
        %v626 = vpack.c.bf16 %v606, %v604
        %v627 = vpack.c.bf16 %v607, %v605
        %v628 = vpack.c.bf16 %v610, %v608
        %v629 = vpack.c.bf16 %v611, %v609
        %v630 = vpack.c.bf16 %v614, %v612
        %v631 = vpack.c.bf16 %v615, %v613
        %v632 = vld [vmem:[#allocation6] sm:$0xff]
        %v633 = vld [vmem:[#allocation6 + $0x8] sm:$0xff]
        %v634 = vld [vmem:[#allocation6 + $0x10] sm:$0xff]
        %v635 = vld [vmem:[#allocation6 + $0x18] sm:$0xff]
        %v636 = vld [vmem:[#allocation6 + $0x20] sm:$0xff]
        %v637 = vld [vmem:[#allocation6 + $0x28] sm:$0xff]
        %v638 = vld [vmem:[#allocation6 + $0x30] sm:$0xff]
        %v639 = vld [vmem:[#allocation6 + $0x38] sm:$0xff]
        %v640 = vld [vmem:[#allocation6 + $0x40] sm:$0xff]
        %v641 = vld [vmem:[#allocation6 + $0x48] sm:$0xff]
        %v642 = vld [vmem:[#allocation6 + $0x50] sm:$0xff]
        %v643 = vld [vmem:[#allocation6 + $0x58] sm:$0xff]
        %v644 = vld [vmem:[#allocation6 + $0x60] sm:$0xff]
        %v645 = vld [vmem:[#allocation6 + $0x68] sm:$0xff]
        %v646 = vld [vmem:[#allocation6 + $0x70] sm:$0xff]
        %v647 = vld [vmem:[#allocation6 + $0x78] sm:$0xff]
        %v648 = vld [vmem:[#allocation6 + $0x80] sm:$0xff]
        %v649 = vld [vmem:[#allocation6 + $0x88] sm:$0xff]
        %v650 = vld [vmem:[#allocation6 + $0x90] sm:$0xff]
        %v651 = vld [vmem:[#allocation6 + $0x98] sm:$0xff]
        %v652 = vld [vmem:[#allocation6 + $0xa0] sm:$0xff]
        %v653 = vld [vmem:[#allocation6 + $0xa8] sm:$0xff]
        %v654 = vld [vmem:[#allocation6 + $0xb0] sm:$0xff]
        %v655 = vld [vmem:[#allocation6 + $0xb8] sm:$0xff]
        %v656 = vld [vmem:[#allocation6 + $0xc0] sm:$0xff]
        %v657 = vld [vmem:[#allocation6 + $0xc8] sm:$0xff]
        %v658 = vld [vmem:[#allocation6 + $0xd0] sm:$0xff]
        %v659 = vld [vmem:[#allocation6 + $0xd8] sm:$0xff]
        %v660 = vld [vmem:[#allocation6 + $0xe0] sm:$0xff]
        %v661 = vld [vmem:[#allocation6 + $0xe8] sm:$0xff]
        %v662 = vld [vmem:[#allocation6 + $0xf0] sm:$0xff]
        %v663 = vld [vmem:[#allocation6 + $0xf8] sm:$0xff]
        %v696 = vunpack.c.l.b16 %v632
        %v697 = vunpack.c.h.b16 %v632
        %v698 = vunpack.c.l.b16 %v633
        %v699 = vunpack.c.h.b16 %v633
        %v700 = vunpack.c.l.b16 %v634
        %v701 = vunpack.c.h.b16 %v634
        %v702 = vunpack.c.l.b16 %v635
        %v703 = vunpack.c.h.b16 %v635
        %v704 = vunpack.c.l.b16 %v636
        %v705 = vunpack.c.h.b16 %v636
        %v706 = vunpack.c.l.b16 %v637
        %v707 = vunpack.c.h.b16 %v637
        %v708 = vunpack.c.l.b16 %v638
        %v709 = vunpack.c.h.b16 %v638
        %v710 = vunpack.c.l.b16 %v639
        %v711 = vunpack.c.h.b16 %v639
        %v712 = vunpack.c.l.b16 %v640
        %v713 = vunpack.c.h.b16 %v640
        %v714 = vunpack.c.l.b16 %v641
        %v715 = vunpack.c.h.b16 %v641
        %v716 = vunpack.c.l.b16 %v642
        %v717 = vunpack.c.h.b16 %v642
        %v718 = vunpack.c.l.b16 %v643
        %v719 = vunpack.c.h.b16 %v643
        %v720 = vunpack.c.l.b16 %v644
        %v721 = vunpack.c.h.b16 %v644
        %v722 = vunpack.c.l.b16 %v645
        %v723 = vunpack.c.h.b16 %v645
        %v724 = vunpack.c.l.b16 %v646
        %v725 = vunpack.c.h.b16 %v646
        %v726 = vunpack.c.l.b16 %v647
        %v727 = vunpack.c.h.b16 %v647
        %v728 = vunpack.c.l.b16 %v648
        %v729 = vunpack.c.h.b16 %v648
        %v730 = vunpack.c.l.b16 %v649
        %v731 = vunpack.c.h.b16 %v649
        %v732 = vunpack.c.l.b16 %v650
        %v733 = vunpack.c.h.b16 %v650
        %v734 = vunpack.c.l.b16 %v651
        %v735 = vunpack.c.h.b16 %v651
        %v736 = vunpack.c.l.b16 %v652
        %v737 = vunpack.c.h.b16 %v652
        %v738 = vunpack.c.l.b16 %v653
        %v739 = vunpack.c.h.b16 %v653
        %v740 = vunpack.c.l.b16 %v654
        %v741 = vunpack.c.h.b16 %v654
        %v742 = vunpack.c.l.b16 %v655
        %v743 = vunpack.c.h.b16 %v655
        %v744 = vunpack.c.l.b16 %v656
        %v745 = vunpack.c.h.b16 %v656
        %v746 = vunpack.c.l.b16 %v657
        %v747 = vunpack.c.h.b16 %v657
        %v748 = vunpack.c.l.b16 %v658
        %v749 = vunpack.c.h.b16 %v658
        %v750 = vunpack.c.l.b16 %v659
        %v751 = vunpack.c.h.b16 %v659
        %v752 = vunpack.c.l.b16 %v660
        %v753 = vunpack.c.h.b16 %v660
        %v754 = vunpack.c.l.b16 %v661
        %v755 = vunpack.c.h.b16 %v661
        %v756 = vunpack.c.l.b16 %v662
        %v757 = vunpack.c.h.b16 %v662
        %v758 = vunpack.c.l.b16 %v663
        %v759 = vunpack.c.h.b16 %v663
        %v760 = vpack.c.b16 %v698, %v696
        %v761 = vpack.c.b16 %v699, %v697
        %v762 = vpack.c.b16 %v702, %v700
        %v763 = vpack.c.b16 %v703, %v701
        %v764 = vpack.c.b16 %v706, %v704
        %v765 = vpack.c.b16 %v707, %v705
        %v766 = vpack.c.b16 %v710, %v708
        %v767 = vpack.c.b16 %v711, %v709
        %v768 = vpack.c.b16 %v714, %v712
        %v769 = vpack.c.b16 %v715, %v713
        %v770 = vpack.c.b16 %v718, %v716
        %v771 = vpack.c.b16 %v719, %v717
        %v772 = vpack.c.b16 %v722, %v720
        %v773 = vpack.c.b16 %v723, %v721
        %v774 = vpack.c.b16 %v726, %v724
        %v775 = vpack.c.b16 %v727, %v725
        %v776 = vpack.c.b16 %v730, %v728
        %v777 = vpack.c.b16 %v731, %v729
        %v778 = vpack.c.b16 %v734, %v732
        %v779 = vpack.c.b16 %v735, %v733
        %v780 = vpack.c.b16 %v738, %v736
        %v781 = vpack.c.b16 %v739, %v737
        %v782 = vpack.c.b16 %v742, %v740
        %v783 = vpack.c.b16 %v743, %v741
        %v784 = vpack.c.b16 %v746, %v744
        %v785 = vpack.c.b16 %v747, %v745
        %v786 = vpack.c.b16 %v750, %v748
        %v787 = vpack.c.b16 %v751, %v749
        %v788 = vpack.c.b16 %v754, %v752
        %v789 = vpack.c.b16 %v755, %v753
        %v790 = vpack.c.b16 %v758, %v756
        %v791 = vpack.c.b16 %v759, %v757
        %824 = vmatprep.subr.bf16.mxu0 %v761
        %825 = vmatpush1.bf16.msra.mxu0 %v760
        %826 = vmatprep.subr.bf16.mxu0 %v763
        %827 = vmatpush1.bf16.msra.mxu0 %v762
        %828 = vmatprep.subr.bf16.mxu0 %v765
        %829 = vmatpush1.bf16.msra.mxu0 %v764
        %830 = vmatprep.subr.bf16.mxu0 %v767
        %831 = vmatpush1.bf16.msra.mxu0 %v766
        %832 = vmatprep.subr.bf16.mxu0 %v769
        %833 = vmatpush1.bf16.msra.mxu0 %v768
        %834 = vmatprep.subr.bf16.mxu0 %v771
        %835 = vmatpush1.bf16.msra.mxu0 %v770
        %836 = vmatprep.subr.bf16.mxu0 %v773
        %837 = vmatpush1.bf16.msra.mxu0 %v772
        %838 = vmatprep.subr.bf16.mxu0 %v775
        %839 = vmatpush1.bf16.msra.mxu0 %v774
        %840 = vmatprep.subr.bf16.mxu0 %v777
        %841 = vmatpush1.bf16.msra.mxu0 %v776
        %842 = vmatprep.subr.bf16.mxu0 %v779
        %843 = vmatpush1.bf16.msra.mxu0 %v778
        %844 = vmatprep.subr.bf16.mxu0 %v781
        %845 = vmatpush1.bf16.msra.mxu0 %v780
        %846 = vmatprep.subr.bf16.mxu0 %v783
        %847 = vmatpush1.bf16.msra.mxu0 %v782
        %848 = vmatprep.subr.bf16.mxu0 %v785
        %849 = vmatpush1.bf16.msra.mxu0 %v784
        %850 = vmatprep.subr.bf16.mxu0 %v787
        %851 = vmatpush1.bf16.msra.mxu0 %v786
        %852 = vmatprep.subr.bf16.mxu0 %v789
        %853 = vmatpush1.bf16.msra.mxu0 %v788
        %854 = vmatprep.subr.bf16.mxu0 %v791
        %855 = vmatpush1.bf16.msra.mxu0 %v790
        %856 = vmatprep.mubr.bf16.mxu0 %v617
        %857 = vmatmul.mubr.bf16.gmra.mrb[0].mxu0 %v616
        %v858 = vpop.f32.mrb[0].mxu0
        %v859 = vadd.f32 0.0, %v858
        %v860 = vpop.f32.mrb[0].mxu0
        %v861 = vadd.f32 0.0, %v860
        %v862 = vpop.f32.mrb[0].mxu0
        %v863 = vadd.f32 0.0, %v862
        %v864 = vpop.f32.mrb[0].mxu0
        %v865 = vadd.f32 0.0, %v864
        %866 = vmatprep.mubr.bf16.mxu0 %v619
        %867 = vmatmul.mubr.bf16.gmra.mrb[0].mxu0 %v618
        %v868 = vpop.f32.mrb[0].mxu0
        %v869 = vadd.f32 0.0, %v868
        %v870 = vpop.f32.mrb[0].mxu0
        %v871 = vadd.f32 0.0, %v870
        %v872 = vpop.f32.mrb[0].mxu0
        %v873 = vadd.f32 0.0, %v872
        %v874 = vpop.f32.mrb[0].mxu0
        %v875 = vadd.f32 0.0, %v874
        %876 = vmatprep.mubr.bf16.mxu0 %v621
        %877 = vmatmul.mubr.bf16.gmra.mrb[0].mxu0 %v620
        %v878 = vpop.f32.mrb[0].mxu0
        %v879 = vadd.f32 0.0, %v878
        %v880 = vpop.f32.mrb[0].mxu0
        %v881 = vadd.f32 0.0, %v880
        %v882 = vpop.f32.mrb[0].mxu0
        %v883 = vadd.f32 0.0, %v882
        %v884 = vpop.f32.mrb[0].mxu0
        %v885 = vadd.f32 0.0, %v884
        %886 = vmatprep.mubr.bf16.mxu0 %v623
        %887 = vmatmul.mubr.bf16.gmra.mrb[0].mxu0 %v622
        %v888 = vpop.f32.mrb[0].mxu0
        %v889 = vadd.f32 0.0, %v888
        %v890 = vpop.f32.mrb[0].mxu0
        %v891 = vadd.f32 0.0, %v890
        %v892 = vpop.f32.mrb[0].mxu0
        %v893 = vadd.f32 0.0, %v892
        %v894 = vpop.f32.mrb[0].mxu0
        %v895 = vadd.f32 0.0, %v894
        %896 = vmatprep.mubr.bf16.mxu0 %v625
        %897 = vmatmul.mubr.bf16.gmra.mrb[0].mxu0 %v624
        %v898 = vpop.f32.mrb[0].mxu0
        %v899 = vadd.f32 0.0, %v898
        %v900 = vpop.f32.mrb[0].mxu0
        %v901 = vadd.f32 0.0, %v900
        %v902 = vpop.f32.mrb[0].mxu0
        %v903 = vadd.f32 0.0, %v902
        %v904 = vpop.f32.mrb[0].mxu0
        %v905 = vadd.f32 0.0, %v904
        %906 = vmatprep.mubr.bf16.mxu0 %v627
        %907 = vmatmul.mubr.bf16.gmra.mrb[0].mxu0 %v626
        %v908 = vpop.f32.mrb[0].mxu0
        %v909 = vadd.f32 0.0, %v908
        %v910 = vpop.f32.mrb[0].mxu0
        %v911 = vadd.f32 0.0, %v910
        %v912 = vpop.f32.mrb[0].mxu0
        %v913 = vadd.f32 0.0, %v912
        %v914 = vpop.f32.mrb[0].mxu0
        %v915 = vadd.f32 0.0, %v914
        %916 = vmatprep.mubr.bf16.mxu0 %v629
        %917 = vmatmul.mubr.bf16.gmra.mrb[0].mxu0 %v628
        %v918 = vpop.f32.mrb[0].mxu0
        %v919 = vadd.f32 0.0, %v918
        %v920 = vpop.f32.mrb[0].mxu0
        %v921 = vadd.f32 0.0, %v920
        %v922 = vpop.f32.mrb[0].mxu0
        %v923 = vadd.f32 0.0, %v922
        %v924 = vpop.f32.mrb[0].mxu0
        %v925 = vadd.f32 0.0, %v924
        %926 = vmatprep.mubr.bf16.mxu0 %v631
        %927 = vmatmul.mubr.bf16.gmra.mrb[0].mxu0 %v630
        %v928 = vpop.f32.mrb[0].mxu0
        %v929 = vadd.f32 0.0, %v928
        %v930 = vpop.f32.mrb[0].mxu0
        %v931 = vadd.f32 0.0, %v930
        %v932 = vpop.f32.mrb[0].mxu0
        %v933 = vadd.f32 0.0, %v932
        %v934 = vpop.f32.mrb[0].mxu0
        %v935 = vadd.f32 0.0, %v934
        %936 = vdwg.mxu0
        %vm937 = vcmp.gt.f32.partialorder %v859, 0.0
        %vm938 = vcmp.gt.f32.partialorder %v861, 0.0
        %vm939 = vcmp.gt.f32.partialorder %v863, 0.0
        %vm940 = vcmp.gt.f32.partialorder %v865, 0.0
        %vm941 = vcmp.gt.f32.partialorder %v869, 0.0
        %vm942 = vcmp.gt.f32.partialorder %v871, 0.0
        %vm943 = vcmp.gt.f32.partialorder %v873, 0.0
        %vm944 = vcmp.gt.f32.partialorder %v875, 0.0
        %vm945 = vcmp.gt.f32.partialorder %v879, 0.0
        %vm946 = vcmp.gt.f32.partialorder %v881, 0.0
        %vm947 = vcmp.gt.f32.partialorder %v883, 0.0
        %vm948 = vcmp.gt.f32.partialorder %v885, 0.0
        %vm949 = vcmp.gt.f32.partialorder %v889, 0.0
        %vm950 = vcmp.gt.f32.partialorder %v891, 0.0
        %vm951 = vcmp.gt.f32.partialorder %v893, 0.0
        %vm952 = vcmp.gt.f32.partialorder %v895, 0.0
        %vm953 = vcmp.gt.f32.partialorder %v899, 0.0
        %vm954 = vcmp.gt.f32.partialorder %v901, 0.0
        %vm955 = vcmp.gt.f32.partialorder %v903, 0.0
        %vm956 = vcmp.gt.f32.partialorder %v905, 0.0
        %vm957 = vcmp.gt.f32.partialorder %v909, 0.0
        %vm958 = vcmp.gt.f32.partialorder %v911, 0.0
        %vm959 = vcmp.gt.f32.partialorder %v913, 0.0
        %vm960 = vcmp.gt.f32.partialorder %v915, 0.0
        %vm961 = vcmp.gt.f32.partialorder %v919, 0.0
        %vm962 = vcmp.gt.f32.partialorder %v921, 0.0
        %vm963 = vcmp.gt.f32.partialorder %v923, 0.0
        %vm964 = vcmp.gt.f32.partialorder %v925, 0.0
        %vm965 = vcmp.gt.f32.partialorder %v929, 0.0
        %vm966 = vcmp.gt.f32.partialorder %v931, 0.0
        %vm967 = vcmp.gt.f32.partialorder %v933, 0.0
        %vm968 = vcmp.gt.f32.partialorder %v935, 0.0
        %vm969 = vmxor %vm278, 1
        %vm970 = vmxor %vm279, 1
        %vm971 = vmxor %vm280, 1
        %vm972 = vmxor %vm281, 1
        %vm973 = vmxor %vm282, 1
        %vm974 = vmxor %vm283, 1
        %vm975 = vmxor %vm284, 1
        %vm976 = vmxor %vm285, 1
        %vm977 = vmxor %vm286, 1
        %vm978 = vmxor %vm287, 1
        %vm979 = vmxor %vm288, 1
        %vm980 = vmxor %vm289, 1
        %vm981 = vmxor %vm290, 1
        %vm982 = vmxor %vm291, 1
        %vm983 = vmxor %vm292, 1
        %vm984 = vmxor %vm293, 1
        %v985 = vsel %vm969, 65537, 0
        %v986 = vsel %vm970, 65537, 0
        %v987 = vsel %vm971, 65537, 0
        %v988 = vsel %vm972, 65537, 0
        %v989 = vsel %vm973, 65537, 0
        %v990 = vsel %vm974, 65537, 0
        %v991 = vsel %vm975, 65537, 0
        %v992 = vsel %vm976, 65537, 0
        %v993 = vsel %vm977, 65537, 0
        %v994 = vsel %vm978, 65537, 0
        %v995 = vsel %vm979, 65537, 0
        %v996 = vsel %vm980, 65537, 0
        %v997 = vsel %vm981, 65537, 0
        %v998 = vsel %vm982, 65537, 0
        %v999 = vsel %vm983, 65537, 0
        %v1000 = vsel %vm984, 65537, 0
        %v1001 = vunpack.c.l.b16 %v985
        %v1002 = vunpack.c.h.b16 %v985
        %v1003 = vunpack.c.l.b16 %v986
        %v1004 = vunpack.c.h.b16 %v986
        %v1005 = vunpack.c.l.b16 %v987
        %v1006 = vunpack.c.h.b16 %v987
        %v1007 = vunpack.c.l.b16 %v988
        %v1008 = vunpack.c.h.b16 %v988
        %v1009 = vunpack.c.l.b16 %v989
        %v1010 = vunpack.c.h.b16 %v989
        %v1011 = vunpack.c.l.b16 %v990
        %v1012 = vunpack.c.h.b16 %v990
        %v1013 = vunpack.c.l.b16 %v991
        %v1014 = vunpack.c.h.b16 %v991
        %v1015 = vunpack.c.l.b16 %v992
        %v1016 = vunpack.c.h.b16 %v992
        %v1017 = vunpack.c.l.b16 %v993
        %v1018 = vunpack.c.h.b16 %v993
        %v1019 = vunpack.c.l.b16 %v994
        %v1020 = vunpack.c.h.b16 %v994
        %v1021 = vunpack.c.l.b16 %v995
        %v1022 = vunpack.c.h.b16 %v995
        %v1023 = vunpack.c.l.b16 %v996
        %v1024 = vunpack.c.h.b16 %v996
        %v1025 = vunpack.c.l.b16 %v997
        %v1026 = vunpack.c.h.b16 %v997
        %v1027 = vunpack.c.l.b16 %v998
        %v1028 = vunpack.c.h.b16 %v998
        %v1029 = vunpack.c.l.b16 %v999
        %v1030 = vunpack.c.h.b16 %v999
        %v1031 = vunpack.c.l.b16 %v1000
        %v1032 = vunpack.c.h.b16 %v1000
        %vm1033 = vcmp.ne.s32.totalorder %v1001, 0
        %vm1034 = vcmp.ne.s32.totalorder %v1002, 0
        %vm1035 = vcmp.ne.s32.totalorder %v1003, 0
        %vm1036 = vcmp.ne.s32.totalorder %v1004, 0
        %vm1037 = vcmp.ne.s32.totalorder %v1005, 0
        %vm1038 = vcmp.ne.s32.totalorder %v1006, 0
        %vm1039 = vcmp.ne.s32.totalorder %v1007, 0
        %vm1040 = vcmp.ne.s32.totalorder %v1008, 0
        %vm1041 = vcmp.ne.s32.totalorder %v1009, 0
        %vm1042 = vcmp.ne.s32.totalorder %v1010, 0
        %vm1043 = vcmp.ne.s32.totalorder %v1011, 0
        %vm1044 = vcmp.ne.s32.totalorder %v1012, 0
        %vm1045 = vcmp.ne.s32.totalorder %v1013, 0
        %vm1046 = vcmp.ne.s32.totalorder %v1014, 0
        %vm1047 = vcmp.ne.s32.totalorder %v1015, 0
        %vm1048 = vcmp.ne.s32.totalorder %v1016, 0
        %vm1049 = vcmp.ne.s32.totalorder %v1017, 0
        %vm1050 = vcmp.ne.s32.totalorder %v1018, 0
        %vm1051 = vcmp.ne.s32.totalorder %v1019, 0
        %vm1052 = vcmp.ne.s32.totalorder %v1020, 0
        %vm1053 = vcmp.ne.s32.totalorder %v1021, 0
        %vm1054 = vcmp.ne.s32.totalorder %v1022, 0
        %vm1055 = vcmp.ne.s32.totalorder %v1023, 0
        %vm1056 = vcmp.ne.s32.totalorder %v1024, 0
        %vm1057 = vcmp.ne.s32.totalorder %v1025, 0
        %vm1058 = vcmp.ne.s32.totalorder %v1026, 0
        %vm1059 = vcmp.ne.s32.totalorder %v1027, 0
        %vm1060 = vcmp.ne.s32.totalorder %v1028, 0
        %vm1061 = vcmp.ne.s32.totalorder %v1029, 0
        %vm1062 = vcmp.ne.s32.totalorder %v1030, 0
        %vm1063 = vcmp.ne.s32.totalorder %v1031, 0
        %vm1064 = vcmp.ne.s32.totalorder %v1032, 0
        %vm1065 = vmand %vm937, %vm1033
        %vm1066 = vmand %vm938, %vm1034
        %vm1067 = vmand %vm939, %vm1035
        %vm1068 = vmand %vm940, %vm1036
        %vm1069 = vmand %vm941, %vm1037
        %vm1070 = vmand %vm942, %vm1038
        %vm1071 = vmand %vm943, %vm1039
        %vm1072 = vmand %vm944, %vm1040
        %vm1073 = vmand %vm945, %vm1041
        %vm1074 = vmand %vm946, %vm1042
        %vm1075 = vmand %vm947, %vm1043
        %vm1076 = vmand %vm948, %vm1044
        %vm1077 = vmand %vm949, %vm1045
        %vm1078 = vmand %vm950, %vm1046
        %vm1079 = vmand %vm951, %vm1047
        %vm1080 = vmand %vm952, %vm1048
        %vm1081 = vmand %vm953, %vm1049
        %vm1082 = vmand %vm954, %vm1050
        %vm1083 = vmand %vm955, %vm1051
        %vm1084 = vmand %vm956, %vm1052
        %vm1085 = vmand %vm957, %vm1053
        %vm1086 = vmand %vm958, %vm1054
        %vm1087 = vmand %vm959, %vm1055
        %vm1088 = vmand %vm960, %vm1056
        %vm1089 = vmand %vm961, %vm1057
        %vm1090 = vmand %vm962, %vm1058
        %vm1091 = vmand %vm963, %vm1059
        %vm1092 = vmand %vm964, %vm1060
        %vm1093 = vmand %vm965, %vm1061
        %vm1094 = vmand %vm966, %vm1062
        %vm1095 = vmand %vm967, %vm1063
        %vm1096 = vmand %vm968, %vm1064
        %s1097 = sld [smem:[#allocation2 + $0x2]]
        %v1098 = vstv %s1097
        %v1099 = vsel %vm1065, %v1098, %v440
        %v1100 = vsel %vm1066, %v1098, %v441
        %v1101 = vsel %vm1067, %v1098, %v442
        %v1102 = vsel %vm1068, %v1098, %v443
        %v1103 = vsel %vm1069, %v1098, %v444
        %v1104 = vsel %vm1070, %v1098, %v445
        %v1105 = vsel %vm1071, %v1098, %v446
        %v1106 = vsel %vm1072, %v1098, %v447
        %v1107 = vsel %vm1073, %v1098, %v448
        %v1108 = vsel %vm1074, %v1098, %v449
        %v1109 = vsel %vm1075, %v1098, %v450
        %v1110 = vsel %vm1076, %v1098, %v451
        %v1111 = vsel %vm1077, %v1098, %v452
        %v1112 = vsel %vm1078, %v1098, %v453
        %v1113 = vsel %vm1079, %v1098, %v454
        %v1114 = vsel %vm1080, %v1098, %v455
        %v1115 = vsel %vm1081, %v1098, %v456
        %v1116 = vsel %vm1082, %v1098, %v457
        %v1117 = vsel %vm1083, %v1098, %v458
        %v1118 = vsel %vm1084, %v1098, %v459
        %v1119 = vsel %vm1085, %v1098, %v460
        %v1120 = vsel %vm1086, %v1098, %v461
        %v1121 = vsel %vm1087, %v1098, %v462
        %v1122 = vsel %vm1088, %v1098, %v463
        %v1123 = vsel %vm1089, %v1098, %v464
        %v1124 = vsel %vm1090, %v1098, %v465
        %v1125 = vsel %vm1091, %v1098, %v466
        %v1126 = vsel %vm1092, %v1098, %v467
        %v1127 = vsel %vm1093, %v1098, %v468
        %v1128 = vsel %vm1094, %v1098, %v469
        %v1129 = vsel %vm1095, %v1098, %v470
        %v1130 = vsel %vm1096, %v1098, %v471
        %v1131 = vsel %vm937, 1, 0
        %v1132 = vsel %vm938, 1, 0
        %v1133 = vsel %vm939, 1, 0
        %v1134 = vsel %vm940, 1, 0
        %v1135 = vsel %vm941, 1, 0
        %v1136 = vsel %vm942, 1, 0
        %v1137 = vsel %vm943, 1, 0
        %v1138 = vsel %vm944, 1, 0
        %v1139 = vsel %vm945, 1, 0
        %v1140 = vsel %vm946, 1, 0
        %v1141 = vsel %vm947, 1, 0
        %v1142 = vsel %vm948, 1, 0
        %v1143 = vsel %vm949, 1, 0
        %v1144 = vsel %vm950, 1, 0
        %v1145 = vsel %vm951, 1, 0
        %v1146 = vsel %vm952, 1, 0
        %v1147 = vsel %vm953, 1, 0
        %v1148 = vsel %vm954, 1, 0
        %v1149 = vsel %vm955, 1, 0
        %v1150 = vsel %vm956, 1, 0
        %v1151 = vsel %vm957, 1, 0
        %v1152 = vsel %vm958, 1, 0
        %v1153 = vsel %vm959, 1, 0
        %v1154 = vsel %vm960, 1, 0
        %v1155 = vsel %vm961, 1, 0
        %v1156 = vsel %vm962, 1, 0
        %v1157 = vsel %vm963, 1, 0
        %v1158 = vsel %vm964, 1, 0
        %v1159 = vsel %vm965, 1, 0
        %v1160 = vsel %vm966, 1, 0
        %v1161 = vsel %vm967, 1, 0
        %v1162 = vsel %vm968, 1, 0
        %v1163 = vcvt.s32.f32 %v1131
        %v1164 = vcvt.s32.f32 %v1132
        %v1165 = vcvt.s32.f32 %v1133
        %v1166 = vcvt.s32.f32 %v1134
        %v1167 = vcvt.s32.f32 %v1135
        %v1168 = vcvt.s32.f32 %v1136
        %v1169 = vcvt.s32.f32 %v1137
        %v1170 = vcvt.s32.f32 %v1138
        %v1171 = vcvt.s32.f32 %v1139
        %v1172 = vcvt.s32.f32 %v1140
        %v1173 = vcvt.s32.f32 %v1141
        %v1174 = vcvt.s32.f32 %v1142
        %v1175 = vcvt.s32.f32 %v1143
        %v1176 = vcvt.s32.f32 %v1144
        %v1177 = vcvt.s32.f32 %v1145
        %v1178 = vcvt.s32.f32 %v1146
        %v1179 = vcvt.s32.f32 %v1147
        %v1180 = vcvt.s32.f32 %v1148
        %v1181 = vcvt.s32.f32 %v1149
        %v1182 = vcvt.s32.f32 %v1150
        %v1183 = vcvt.s32.f32 %v1151
        %v1184 = vcvt.s32.f32 %v1152
        %v1185 = vcvt.s32.f32 %v1153
        %v1186 = vcvt.s32.f32 %v1154
        %v1187 = vcvt.s32.f32 %v1155
        %v1188 = vcvt.s32.f32 %v1156
        %v1189 = vcvt.s32.f32 %v1157
        %v1190 = vcvt.s32.f32 %v1158
        %v1191 = vcvt.s32.f32 %v1159
        %v1192 = vcvt.s32.f32 %v1160
        %v1193 = vcvt.s32.f32 %v1161
        %v1194 = vcvt.s32.f32 %v1162
        %v1195 = vpack.c.bf16 %v1165, %v1163
        %v1196 = vpack.c.bf16 %v1166, %v1164
        %v1197 = vpack.c.bf16 %v1169, %v1167
        %v1198 = vpack.c.bf16 %v1170, %v1168
        %v1199 = vpack.c.bf16 %v1173, %v1171
        %v1200 = vpack.c.bf16 %v1174, %v1172
        %v1201 = vpack.c.bf16 %v1177, %v1175
        %v1202 = vpack.c.bf16 %v1178, %v1176
        %v1203 = vpack.c.bf16 %v1181, %v1179
        %v1204 = vpack.c.bf16 %v1182, %v1180
        %v1205 = vpack.c.bf16 %v1185, %v1183
        %v1206 = vpack.c.bf16 %v1186, %v1184
        %v1207 = vpack.c.bf16 %v1189, %v1187
        %v1208 = vpack.c.bf16 %v1190, %v1188
        %v1209 = vpack.c.bf16 %v1193, %v1191
        %v1210 = vpack.c.bf16 %v1194, %v1192
        %1211 = vmatprep.subr.bf16.mxu0 %v761
        %1212 = vmatpush1.bf16.msra.mxu0 %v760
        %1213 = vmatprep.subr.bf16.mxu0 %v763
        %1214 = vmatpush1.bf16.msra.mxu0 %v762
        %1215 = vmatprep.subr.bf16.mxu0 %v765
        %1216 = vmatpush1.bf16.msra.mxu0 %v764
        %1217 = vmatprep.subr.bf16.mxu0 %v767
        %1218 = vmatpush1.bf16.msra.mxu0 %v766
        %1219 = vmatprep.subr.bf16.mxu0 %v769
        %1220 = vmatpush1.bf16.msra.mxu0 %v768
        %1221 = vmatprep.subr.bf16.mxu0 %v771
        %1222 = vmatpush1.bf16.msra.mxu0 %v770
        %1223 = vmatprep.subr.bf16.mxu0 %v773
        %1224 = vmatpush1.bf16.msra.mxu0 %v772
        %1225 = vmatprep.subr.bf16.mxu0 %v775
        %1226 = vmatpush1.bf16.msra.mxu0 %v774
        %1227 = vmatprep.subr.bf16.mxu0 %v777
        %1228 = vmatpush1.bf16.msra.mxu0 %v776
        %1229 = vmatprep.subr.bf16.mxu0 %v779
        %1230 = vmatpush1.bf16.msra.mxu0 %v778
        %1231 = vmatprep.subr.bf16.mxu0 %v781
        %1232 = vmatpush1.bf16.msra.mxu0 %v780
        %1233 = vmatprep.subr.bf16.mxu0 %v783
        %1234 = vmatpush1.bf16.msra.mxu0 %v782
        %1235 = vmatprep.subr.bf16.mxu0 %v785
        %1236 = vmatpush1.bf16.msra.mxu0 %v784
        %1237 = vmatprep.subr.bf16.mxu0 %v787
        %1238 = vmatpush1.bf16.msra.mxu0 %v786
        %1239 = vmatprep.subr.bf16.mxu0 %v789
        %1240 = vmatpush1.bf16.msra.mxu0 %v788
        %1241 = vmatprep.subr.bf16.mxu0 %v791
        %1242 = vmatpush1.bf16.msra.mxu0 %v790
        %1243 = vmatprep.mubr.bf16.mxu0 %v1196
        %1244 = vmatmul.mubr.bf16.gmra.mrb[0].mxu0 %v1195
        %v1245 = vpop.f32.mrb[0].mxu0
        %v1246 = vadd.f32 0.0, %v1245
        %v1247 = vpop.f32.mrb[0].mxu0
        %v1248 = vadd.f32 0.0, %v1247
        %v1249 = vpop.f32.mrb[0].mxu0
        %v1250 = vadd.f32 0.0, %v1249
        %v1251 = vpop.f32.mrb[0].mxu0
        %v1252 = vadd.f32 0.0, %v1251
        %1253 = vmatprep.mubr.bf16.mxu0 %v1198
        %1254 = vmatmul.mubr.bf16.gmra.mrb[0].mxu0 %v1197
        %v1255 = vpop.f32.mrb[0].mxu0
        %v1256 = vadd.f32 0.0, %v1255
        %v1257 = vpop.f32.mrb[0].mxu0
        %v1258 = vadd.f32 0.0, %v1257
        %v1259 = vpop.f32.mrb[0].mxu0
        %v1260 = vadd.f32 0.0, %v1259
        %v1261 = vpop.f32.mrb[0].mxu0
        %v1262 = vadd.f32 0.0, %v1261
        %1263 = vmatprep.mubr.bf16.mxu0 %v1200
        %1264 = vmatmul.mubr.bf16.gmra.mrb[0].mxu0 %v1199
        %v1265 = vpop.f32.mrb[0].mxu0
        %v1266 = vadd.f32 0.0, %v1265
        %v1267 = vpop.f32.mrb[0].mxu0
        %v1268 = vadd.f32 0.0, %v1267
        %v1269 = vpop.f32.mrb[0].mxu0
        %v1270 = vadd.f32 0.0, %v1269
        %v1271 = vpop.f32.mrb[0].mxu0
        %v1272 = vadd.f32 0.0, %v1271
        %1273 = vmatprep.mubr.bf16.mxu0 %v1202
        %1274 = vmatmul.mubr.bf16.gmra.mrb[0].mxu0 %v1201
        %v1275 = vpop.f32.mrb[0].mxu0
        %v1276 = vadd.f32 0.0, %v1275
        %v1277 = vpop.f32.mrb[0].mxu0
        %v1278 = vadd.f32 0.0, %v1277
        %v1279 = vpop.f32.mrb[0].mxu0
        %v1280 = vadd.f32 0.0, %v1279
        %v1281 = vpop.f32.mrb[0].mxu0
        %v1282 = vadd.f32 0.0, %v1281
        %1283 = vmatprep.mubr.bf16.mxu0 %v1204
        %1284 = vmatmul.mubr.bf16.gmra.mrb[0].mxu0 %v1203
        %v1285 = vpop.f32.mrb[0].mxu0
        %v1286 = vadd.f32 0.0, %v1285
        %v1287 = vpop.f32.mrb[0].mxu0
        %v1288 = vadd.f32 0.0, %v1287
        %v1289 = vpop.f32.mrb[0].mxu0
        %v1290 = vadd.f32 0.0, %v1289
        %v1291 = vpop.f32.mrb[0].mxu0
        %v1292 = vadd.f32 0.0, %v1291
        %1293 = vmatprep.mubr.bf16.mxu0 %v1206
        %1294 = vmatmul.mubr.bf16.gmra.mrb[0].mxu0 %v1205
        %v1295 = vpop.f32.mrb[0].mxu0
        %v1296 = vadd.f32 0.0, %v1295
        %v1297 = vpop.f32.mrb[0].mxu0
        %v1298 = vadd.f32 0.0, %v1297
        %v1299 = vpop.f32.mrb[0].mxu0
        %v1300 = vadd.f32 0.0, %v1299
        %v1301 = vpop.f32.mrb[0].mxu0
        %v1302 = vadd.f32 0.0, %v1301
        %1303 = vmatprep.mubr.bf16.mxu0 %v1208
        %1304 = vmatmul.mubr.bf16.gmra.mrb[0].mxu0 %v1207
        %v1305 = vpop.f32.mrb[0].mxu0
        %v1306 = vadd.f32 0.0, %v1305
        %v1307 = vpop.f32.mrb[0].mxu0
        %v1308 = vadd.f32 0.0, %v1307
        %v1309 = vpop.f32.mrb[0].mxu0
        %v1310 = vadd.f32 0.0, %v1309
        %v1311 = vpop.f32.mrb[0].mxu0
        %v1312 = vadd.f32 0.0, %v1311
        %1313 = vmatprep.mubr.bf16.mxu0 %v1210
        %1314 = vmatmul.mubr.bf16.gmra.mrb[0].mxu0 %v1209
        %v1315 = vpop.f32.mrb[0].mxu0
        %v1316 = vadd.f32 0.0, %v1315
        %v1317 = vpop.f32.mrb[0].mxu0
        %v1318 = vadd.f32 0.0, %v1317
        %v1319 = vpop.f32.mrb[0].mxu0
        %v1320 = vadd.f32 0.0, %v1319
        %v1321 = vpop.f32.mrb[0].mxu0
        %v1322 = vadd.f32 0.0, %v1321
        %1323 = vdwg.mxu0
        %vm1324 = vcmp.gt.f32.partialorder %v1246, 0.0
        %vm1325 = vcmp.gt.f32.partialorder %v1248, 0.0
        %vm1326 = vcmp.gt.f32.partialorder %v1250, 0.0
        %vm1327 = vcmp.gt.f32.partialorder %v1252, 0.0
        %vm1328 = vcmp.gt.f32.partialorder %v1256, 0.0
        %vm1329 = vcmp.gt.f32.partialorder %v1258, 0.0
        %vm1330 = vcmp.gt.f32.partialorder %v1260, 0.0
        %vm1331 = vcmp.gt.f32.partialorder %v1262, 0.0
        %vm1332 = vcmp.gt.f32.partialorder %v1266, 0.0
        %vm1333 = vcmp.gt.f32.partialorder %v1268, 0.0
        %vm1334 = vcmp.gt.f32.partialorder %v1270, 0.0
        %vm1335 = vcmp.gt.f32.partialorder %v1272, 0.0
        %vm1336 = vcmp.gt.f32.partialorder %v1276, 0.0
        %vm1337 = vcmp.gt.f32.partialorder %v1278, 0.0
        %vm1338 = vcmp.gt.f32.partialorder %v1280, 0.0
        %vm1339 = vcmp.gt.f32.partialorder %v1282, 0.0
        %vm1340 = vcmp.gt.f32.partialorder %v1286, 0.0
        %vm1341 = vcmp.gt.f32.partialorder %v1288, 0.0
        %vm1342 = vcmp.gt.f32.partialorder %v1290, 0.0
        %vm1343 = vcmp.gt.f32.partialorder %v1292, 0.0
        %vm1344 = vcmp.gt.f32.partialorder %v1296, 0.0
        %vm1345 = vcmp.gt.f32.partialorder %v1298, 0.0
        %vm1346 = vcmp.gt.f32.partialorder %v1300, 0.0
        %vm1347 = vcmp.gt.f32.partialorder %v1302, 0.0
        %vm1348 = vcmp.gt.f32.partialorder %v1306, 0.0
        %vm1349 = vcmp.gt.f32.partialorder %v1308, 0.0
        %vm1350 = vcmp.gt.f32.partialorder %v1310, 0.0
        %vm1351 = vcmp.gt.f32.partialorder %v1312, 0.0
        %vm1352 = vcmp.gt.f32.partialorder %v1316, 0.0
        %vm1353 = vcmp.gt.f32.partialorder %v1318, 0.0
        %vm1354 = vcmp.gt.f32.partialorder %v1320, 0.0
        %vm1355 = vcmp.gt.f32.partialorder %v1322, 0.0
        %vm1356 = vmxor %vm937, 1
        %vm1357 = vmxor %vm938, 1
        %vm1358 = vmxor %vm939, 1
        %vm1359 = vmxor %vm940, 1
        %vm1360 = vmxor %vm941, 1
        %vm1361 = vmxor %vm942, 1
        %vm1362 = vmxor %vm943, 1
        %vm1363 = vmxor %vm944, 1
        %vm1364 = vmxor %vm945, 1
        %vm1365 = vmxor %vm946, 1
        %vm1366 = vmxor %vm947, 1
        %vm1367 = vmxor %vm948, 1
        %vm1368 = vmxor %vm949, 1
        %vm1369 = vmxor %vm950, 1
        %vm1370 = vmxor %vm951, 1
        %vm1371 = vmxor %vm952, 1
        %vm1372 = vmxor %vm953, 1
        %vm1373 = vmxor %vm954, 1
        %vm1374 = vmxor %vm955, 1
        %vm1375 = vmxor %vm956, 1
        %vm1376 = vmxor %vm957, 1
        %vm1377 = vmxor %vm958, 1
        %vm1378 = vmxor %vm959, 1
        %vm1379 = vmxor %vm960, 1
        %vm1380 = vmxor %vm961, 1
        %vm1381 = vmxor %vm962, 1
        %vm1382 = vmxor %vm963, 1
        %vm1383 = vmxor %vm964, 1
        %vm1384 = vmxor %vm965, 1
        %vm1385 = vmxor %vm966, 1
        %vm1386 = vmxor %vm967, 1
        %vm1387 = vmxor %vm968, 1
        %vm1388 = vmand %vm1324, %vm1356
        %vm1389 = vmand %vm1325, %vm1357
        %vm1390 = vmand %vm1326, %vm1358
        %vm1391 = vmand %vm1327, %vm1359
        %vm1392 = vmand %vm1328, %vm1360
        %vm1393 = vmand %vm1329, %vm1361
        %vm1394 = vmand %vm1330, %vm1362
        %vm1395 = vmand %vm1331, %vm1363
        %vm1396 = vmand %vm1332, %vm1364
        %vm1397 = vmand %vm1333, %vm1365
        %vm1398 = vmand %vm1334, %vm1366
        %vm1399 = vmand %vm1335, %vm1367
        %vm1400 = vmand %vm1336, %vm1368
        %vm1401 = vmand %vm1337, %vm1369
        %vm1402 = vmand %vm1338, %vm1370
        %vm1403 = vmand %vm1339, %vm1371
        %vm1404 = vmand %vm1340, %vm1372
        %vm1405 = vmand %vm1341, %vm1373
        %vm1406 = vmand %vm1342, %vm1374
        %vm1407 = vmand %vm1343, %vm1375
        %vm1408 = vmand %vm1344, %vm1376
        %vm1409 = vmand %vm1345, %vm1377
        %vm1410 = vmand %vm1346, %vm1378
        %vm1411 = vmand %vm1347, %vm1379
        %vm1412 = vmand %vm1348, %vm1380
        %vm1413 = vmand %vm1349, %vm1381
        %vm1414 = vmand %vm1350, %vm1382
        %vm1415 = vmand %vm1351, %vm1383
        %vm1416 = vmand %vm1352, %vm1384
        %vm1417 = vmand %vm1353, %vm1385
        %vm1418 = vmand %vm1354, %vm1386
        %vm1419 = vmand %vm1355, %vm1387
        %s1420 = sld [smem:[#allocation2 + $0x3]]
        %v1421 = vstv %s1420
        %v1422 = vsel %vm1388, %v1421, %v1099
        %v1423 = vsel %vm1389, %v1421, %v1100
        %v1424 = vsel %vm1390, %v1421, %v1101
        %v1425 = vsel %vm1391, %v1421, %v1102
        %v1426 = vsel %vm1392, %v1421, %v1103
        %v1427 = vsel %vm1393, %v1421, %v1104
        %v1428 = vsel %vm1394, %v1421, %v1105
        %v1429 = vsel %vm1395, %v1421, %v1106
        %v1430 = vsel %vm1396, %v1421, %v1107
        %v1431 = vsel %vm1397, %v1421, %v1108
        %v1432 = vsel %vm1398, %v1421, %v1109
        %v1433 = vsel %vm1399, %v1421, %v1110
        %v1434 = vsel %vm1400, %v1421, %v1111
        %v1435 = vsel %vm1401, %v1421, %v1112
        %v1436 = vsel %vm1402, %v1421, %v1113
        %v1437 = vsel %vm1403, %v1421, %v1114
        %v1438 = vsel %vm1404, %v1421, %v1115
        %v1439 = vsel %vm1405, %v1421, %v1116
        %v1440 = vsel %vm1406, %v1421, %v1117
        %v1441 = vsel %vm1407, %v1421, %v1118
        %v1442 = vsel %vm1408, %v1421, %v1119
        %v1443 = vsel %vm1409, %v1421, %v1120
        %v1444 = vsel %vm1410, %v1421, %v1121
        %v1445 = vsel %vm1411, %v1421, %v1122
        %v1446 = vsel %vm1412, %v1421, %v1123
        %v1447 = vsel %vm1413, %v1421, %v1124
        %v1448 = vsel %vm1414, %v1421, %v1125
        %v1449 = vsel %vm1415, %v1421, %v1126
        %v1450 = vsel %vm1416, %v1421, %v1127
        %v1451 = vsel %vm1417, %v1421, %v1128
        %v1452 = vsel %vm1418, %v1421, %v1129
        %v1453 = vsel %vm1419, %v1421, %v1130
        %v1454 = vsel %vm1324, 1, 0
        %v1455 = vsel %vm1325, 1, 0
        %v1456 = vsel %vm1326, 1, 0
        %v1457 = vsel %vm1327, 1, 0
        %v1458 = vsel %vm1328, 1, 0
        %v1459 = vsel %vm1329, 1, 0
        %v1460 = vsel %vm1330, 1, 0
        %v1461 = vsel %vm1331, 1, 0
        %v1462 = vsel %vm1332, 1, 0
        %v1463 = vsel %vm1333, 1, 0
        %v1464 = vsel %vm1334, 1, 0
        %v1465 = vsel %vm1335, 1, 0
        %v1466 = vsel %vm1336, 1, 0
        %v1467 = vsel %vm1337, 1, 0
        %v1468 = vsel %vm1338, 1, 0
        %v1469 = vsel %vm1339, 1, 0
        %v1470 = vsel %vm1340, 1, 0
        %v1471 = vsel %vm1341, 1, 0
        %v1472 = vsel %vm1342, 1, 0
        %v1473 = vsel %vm1343, 1, 0
        %v1474 = vsel %vm1344, 1, 0
        %v1475 = vsel %vm1345, 1, 0
        %v1476 = vsel %vm1346, 1, 0
        %v1477 = vsel %vm1347, 1, 0
        %v1478 = vsel %vm1348, 1, 0
        %v1479 = vsel %vm1349, 1, 0
        %v1480 = vsel %vm1350, 1, 0
        %v1481 = vsel %vm1351, 1, 0
        %v1482 = vsel %vm1352, 1, 0
        %v1483 = vsel %vm1353, 1, 0
        %v1484 = vsel %vm1354, 1, 0
        %v1485 = vsel %vm1355, 1, 0
        %v1486 = vcvt.s32.f32 %v1454
        %v1487 = vcvt.s32.f32 %v1455
        %v1488 = vcvt.s32.f32 %v1456
        %v1489 = vcvt.s32.f32 %v1457
        %v1490 = vcvt.s32.f32 %v1458
        %v1491 = vcvt.s32.f32 %v1459
        %v1492 = vcvt.s32.f32 %v1460
        %v1493 = vcvt.s32.f32 %v1461
        %v1494 = vcvt.s32.f32 %v1462
        %v1495 = vcvt.s32.f32 %v1463
        %v1496 = vcvt.s32.f32 %v1464
        %v1497 = vcvt.s32.f32 %v1465
        %v1498 = vcvt.s32.f32 %v1466
        %v1499 = vcvt.s32.f32 %v1467
        %v1500 = vcvt.s32.f32 %v1468
        %v1501 = vcvt.s32.f32 %v1469
        %v1502 = vcvt.s32.f32 %v1470
        %v1503 = vcvt.s32.f32 %v1471
        %v1504 = vcvt.s32.f32 %v1472
        %v1505 = vcvt.s32.f32 %v1473
        %v1506 = vcvt.s32.f32 %v1474
        %v1507 = vcvt.s32.f32 %v1475
        %v1508 = vcvt.s32.f32 %v1476
        %v1509 = vcvt.s32.f32 %v1477
        %v1510 = vcvt.s32.f32 %v1478
        %v1511 = vcvt.s32.f32 %v1479
        %v1512 = vcvt.s32.f32 %v1480
        %v1513 = vcvt.s32.f32 %v1481
        %v1514 = vcvt.s32.f32 %v1482
        %v1515 = vcvt.s32.f32 %v1483
        %v1516 = vcvt.s32.f32 %v1484
        %v1517 = vcvt.s32.f32 %v1485
        %v1518 = vpack.c.bf16 %v1488, %v1486
        %v1519 = vpack.c.bf16 %v1489, %v1487
        %v1520 = vpack.c.bf16 %v1492, %v1490
        %v1521 = vpack.c.bf16 %v1493, %v1491
        %v1522 = vpack.c.bf16 %v1496, %v1494
        %v1523 = vpack.c.bf16 %v1497, %v1495
        %v1524 = vpack.c.bf16 %v1500, %v1498
        %v1525 = vpack.c.bf16 %v1501, %v1499
        %v1526 = vpack.c.bf16 %v1504, %v1502
        %v1527 = vpack.c.bf16 %v1505, %v1503
        %v1528 = vpack.c.bf16 %v1508, %v1506
        %v1529 = vpack.c.bf16 %v1509, %v1507
        %v1530 = vpack.c.bf16 %v1512, %v1510
        %v1531 = vpack.c.bf16 %v1513, %v1511
        %v1532 = vpack.c.bf16 %v1516, %v1514
        %v1533 = vpack.c.bf16 %v1517, %v1515
        %1534 = vmatprep.subr.bf16.mxu0 %v761
        %1535 = vmatpush1.bf16.msra.mxu0 %v760
        %1536 = vmatprep.subr.bf16.mxu0 %v763
        %1537 = vmatpush1.bf16.msra.mxu0 %v762
        %1538 = vmatprep.subr.bf16.mxu0 %v765
        %1539 = vmatpush1.bf16.msra.mxu0 %v764
        %1540 = vmatprep.subr.bf16.mxu0 %v767
        %1541 = vmatpush1.bf16.msra.mxu0 %v766
        %1542 = vmatprep.subr.bf16.mxu0 %v769
        %1543 = vmatpush1.bf16.msra.mxu0 %v768
        %1544 = vmatprep.subr.bf16.mxu0 %v771
        %1545 = vmatpush1.bf16.msra.mxu0 %v770
        %1546 = vmatprep.subr.bf16.mxu0 %v773
        %1547 = vmatpush1.bf16.msra.mxu0 %v772
        %1548 = vmatprep.subr.bf16.mxu0 %v775
        %1549 = vmatpush1.bf16.msra.mxu0 %v774
        %1550 = vmatprep.subr.bf16.mxu0 %v777
        %1551 = vmatpush1.bf16.msra.mxu0 %v776
        %1552 = vmatprep.subr.bf16.mxu0 %v779
        %1553 = vmatpush1.bf16.msra.mxu0 %v778
        %1554 = vmatprep.subr.bf16.mxu0 %v781
        %1555 = vmatpush1.bf16.msra.mxu0 %v780
        %1556 = vmatprep.subr.bf16.mxu0 %v783
        %1557 = vmatpush1.bf16.msra.mxu0 %v782
        %1558 = vmatprep.subr.bf16.mxu0 %v785
        %1559 = vmatpush1.bf16.msra.mxu0 %v784
        %1560 = vmatprep.subr.bf16.mxu0 %v787
        %1561 = vmatpush1.bf16.msra.mxu0 %v786
        %1562 = vmatprep.subr.bf16.mxu0 %v789
        %1563 = vmatpush1.bf16.msra.mxu0 %v788
        %1564 = vmatprep.subr.bf16.mxu0 %v791
        %1565 = vmatpush1.bf16.msra.mxu0 %v790
        %1566 = vmatprep.mubr.bf16.mxu0 %v1519
        %1567 = vmatmul.mubr.bf16.gmra.mrb[0].mxu0 %v1518
        %v1568 = vpop.f32.mrb[0].mxu0
        %v1569 = vadd.f32 0.0, %v1568
        %v1570 = vpop.f32.mrb[0].mxu0
        %v1571 = vadd.f32 0.0, %v1570
        %v1572 = vpop.f32.mrb[0].mxu0
        %v1573 = vadd.f32 0.0, %v1572
        %v1574 = vpop.f32.mrb[0].mxu0
        %v1575 = vadd.f32 0.0, %v1574
        %1576 = vmatprep.mubr.bf16.mxu0 %v1521
        %1577 = vmatmul.mubr.bf16.gmra.mrb[0].mxu0 %v1520
        %v1578 = vpop.f32.mrb[0].mxu0
        %v1579 = vadd.f32 0.0, %v1578
        %v1580 = vpop.f32.mrb[0].mxu0
        %v1581 = vadd.f32 0.0, %v1580
        %v1582 = vpop.f32.mrb[0].mxu0
        %v1583 = vadd.f32 0.0, %v1582
        %v1584 = vpop.f32.mrb[0].mxu0
        %v1585 = vadd.f32 0.0, %v1584
        %1586 = vmatprep.mubr.bf16.mxu0 %v1523
        %1587 = vmatmul.mubr.bf16.gmra.mrb[0].mxu0 %v1522
        %v1588 = vpop.f32.mrb[0].mxu0
        %v1589 = vadd.f32 0.0, %v1588
        %v1590 = vpop.f32.mrb[0].mxu0
        %v1591 = vadd.f32 0.0, %v1590
        %v1592 = vpop.f32.mrb[0].mxu0
        %v1593 = vadd.f32 0.0, %v1592
        %v1594 = vpop.f32.mrb[0].mxu0
        %v1595 = vadd.f32 0.0, %v1594
        %1596 = vmatprep.mubr.bf16.mxu0 %v1525
        %1597 = vmatmul.mubr.bf16.gmra.mrb[0].mxu0 %v1524
        %v1598 = vpop.f32.mrb[0].mxu0
        %v1599 = vadd.f32 0.0, %v1598
        %v1600 = vpop.f32.mrb[0].mxu0
        %v1601 = vadd.f32 0.0, %v1600
        %v1602 = vpop.f32.mrb[0].mxu0
        %v1603 = vadd.f32 0.0, %v1602
        %v1604 = vpop.f32.mrb[0].mxu0
        %v1605 = vadd.f32 0.0, %v1604
        %1606 = vmatprep.mubr.bf16.mxu0 %v1527
        %1607 = vmatmul.mubr.bf16.gmra.mrb[0].mxu0 %v1526
        %v1608 = vpop.f32.mrb[0].mxu0
        %v1609 = vadd.f32 0.0, %v1608
        %v1610 = vpop.f32.mrb[0].mxu0
        %v1611 = vadd.f32 0.0, %v1610
        %v1612 = vpop.f32.mrb[0].mxu0
        %v1613 = vadd.f32 0.0, %v1612
        %v1614 = vpop.f32.mrb[0].mxu0
        %v1615 = vadd.f32 0.0, %v1614
        %1616 = vmatprep.mubr.bf16.mxu0 %v1529
        %1617 = vmatmul.mubr.bf16.gmra.mrb[0].mxu0 %v1528
        %v1618 = vpop.f32.mrb[0].mxu0
        %v1619 = vadd.f32 0.0, %v1618
        %v1620 = vpop.f32.mrb[0].mxu0
        %v1621 = vadd.f32 0.0, %v1620
        %v1622 = vpop.f32.mrb[0].mxu0
        %v1623 = vadd.f32 0.0, %v1622
        %v1624 = vpop.f32.mrb[0].mxu0
        %v1625 = vadd.f32 0.0, %v1624
        %1626 = vmatprep.mubr.bf16.mxu0 %v1531
        %1627 = vmatmul.mubr.bf16.gmra.mrb[0].mxu0 %v1530
        %v1628 = vpop.f32.mrb[0].mxu0
        %v1629 = vadd.f32 0.0, %v1628
        %v1630 = vpop.f32.mrb[0].mxu0
        %v1631 = vadd.f32 0.0, %v1630
        %v1632 = vpop.f32.mrb[0].mxu0
        %v1633 = vadd.f32 0.0, %v1632
        %v1634 = vpop.f32.mrb[0].mxu0
        %v1635 = vadd.f32 0.0, %v1634
        %1636 = vmatprep.mubr.bf16.mxu0 %v1533
        %1637 = vmatmul.mubr.bf16.gmra.mrb[0].mxu0 %v1532
        %v1638 = vpop.f32.mrb[0].mxu0
        %v1639 = vadd.f32 0.0, %v1638
        %v1640 = vpop.f32.mrb[0].mxu0
        %v1641 = vadd.f32 0.0, %v1640
        %v1642 = vpop.f32.mrb[0].mxu0
        %v1643 = vadd.f32 0.0, %v1642
        %v1644 = vpop.f32.mrb[0].mxu0
        %v1645 = vadd.f32 0.0, %v1644
        %1646 = vdwg.mxu0
        %vm1647 = vcmp.gt.f32.partialorder %v1569, 0.0
        %vm1648 = vcmp.gt.f32.partialorder %v1571, 0.0
        %vm1649 = vcmp.gt.f32.partialorder %v1573, 0.0
        %vm1650 = vcmp.gt.f32.partialorder %v1575, 0.0
        %vm1651 = vcmp.gt.f32.partialorder %v1579, 0.0
        %vm1652 = vcmp.gt.f32.partialorder %v1581, 0.0
        %vm1653 = vcmp.gt.f32.partialorder %v1583, 0.0
        %vm1654 = vcmp.gt.f32.partialorder %v1585, 0.0
        %vm1655 = vcmp.gt.f32.partialorder %v1589, 0.0
        %vm1656 = vcmp.gt.f32.partialorder %v1591, 0.0
        %vm1657 = vcmp.gt.f32.partialorder %v1593, 0.0
        %vm1658 = vcmp.gt.f32.partialorder %v1595, 0.0
        %vm1659 = vcmp.gt.f32.partialorder %v1599, 0.0
        %vm1660 = vcmp.gt.f32.partialorder %v1601, 0.0
        %vm1661 = vcmp.gt.f32.partialorder %v1603, 0.0
        %vm1662 = vcmp.gt.f32.partialorder %v1605, 0.0
        %vm1663 = vcmp.gt.f32.partialorder %v1609, 0.0
        %vm1664 = vcmp.gt.f32.partialorder %v1611, 0.0
        %vm1665 = vcmp.gt.f32.partialorder %v1613, 0.0
        %vm1666 = vcmp.gt.f32.partialorder %v1615, 0.0
        %vm1667 = vcmp.gt.f32.partialorder %v1619, 0.0
        %vm1668 = vcmp.gt.f32.partialorder %v1621, 0.0
        %vm1669 = vcmp.gt.f32.partialorder %v1623, 0.0
        %vm1670 = vcmp.gt.f32.partialorder %v1625, 0.0
        %vm1671 = vcmp.gt.f32.partialorder %v1629, 0.0
        %vm1672 = vcmp.gt.f32.partialorder %v1631, 0.0
        %vm1673 = vcmp.gt.f32.partialorder %v1633, 0.0
        %vm1674 = vcmp.gt.f32.partialorder %v1635, 0.0
        %vm1675 = vcmp.gt.f32.partialorder %v1639, 0.0
        %vm1676 = vcmp.gt.f32.partialorder %v1641, 0.0
        %vm1677 = vcmp.gt.f32.partialorder %v1643, 0.0
        %vm1678 = vcmp.gt.f32.partialorder %v1645, 0.0
        %vm1679 = vmxor %vm1324, 1
        %vm1680 = vmxor %vm1325, 1
        %vm1681 = vmxor %vm1326, 1
        %vm1682 = vmxor %vm1327, 1
        %vm1683 = vmxor %vm1328, 1
        %vm1684 = vmxor %vm1329, 1
        %vm1685 = vmxor %vm1330, 1
        %vm1686 = vmxor %vm1331, 1
        %vm1687 = vmxor %vm1332, 1
        %vm1688 = vmxor %vm1333, 1
        %vm1689 = vmxor %vm1334, 1
        %vm1690 = vmxor %vm1335, 1
        %vm1691 = vmxor %vm1336, 1
        %vm1692 = vmxor %vm1337, 1
        %vm1693 = vmxor %vm1338, 1
        %vm1694 = vmxor %vm1339, 1
        %vm1695 = vmxor %vm1340, 1
        %vm1696 = vmxor %vm1341, 1
        %vm1697 = vmxor %vm1342, 1
        %vm1698 = vmxor %vm1343, 1
        %vm1699 = vmxor %vm1344, 1
        %vm1700 = vmxor %vm1345, 1
        %vm1701 = vmxor %vm1346, 1
        %vm1702 = vmxor %vm1347, 1
        %vm1703 = vmxor %vm1348, 1
        %vm1704 = vmxor %vm1349, 1
        %vm1705 = vmxor %vm1350, 1
        %vm1706 = vmxor %vm1351, 1
        %vm1707 = vmxor %vm1352, 1
        %vm1708 = vmxor %vm1353, 1
        %vm1709 = vmxor %vm1354, 1
        %vm1710 = vmxor %vm1355, 1
        %vm1711 = vmand %vm1647, %vm1679
        %vm1712 = vmand %vm1648, %vm1680
        %vm1713 = vmand %vm1649, %vm1681
        %vm1714 = vmand %vm1650, %vm1682
        %vm1715 = vmand %vm1651, %vm1683
        %vm1716 = vmand %vm1652, %vm1684
        %vm1717 = vmand %vm1653, %vm1685
        %vm1718 = vmand %vm1654, %vm1686
        %vm1719 = vmand %vm1655, %vm1687
        %vm1720 = vmand %vm1656, %vm1688
        %vm1721 = vmand %vm1657, %vm1689
        %vm1722 = vmand %vm1658, %vm1690
        %vm1723 = vmand %vm1659, %vm1691
        %vm1724 = vmand %vm1660, %vm1692
        %vm1725 = vmand %vm1661, %vm1693
        %vm1726 = vmand %vm1662, %vm1694
        %vm1727 = vmand %vm1663, %vm1695
        %vm1728 = vmand %vm1664, %vm1696
        %vm1729 = vmand %vm1665, %vm1697
        %vm1730 = vmand %vm1666, %vm1698
        %vm1731 = vmand %vm1667, %vm1699
        %vm1732 = vmand %vm1668, %vm1700
        %vm1733 = vmand %vm1669, %vm1701
        %vm1734 = vmand %vm1670, %vm1702
        %vm1735 = vmand %vm1671, %vm1703
        %vm1736 = vmand %vm1672, %vm1704
        %vm1737 = vmand %vm1673, %vm1705
        %vm1738 = vmand %vm1674, %vm1706
        %vm1739 = vmand %vm1675, %vm1707
        %vm1740 = vmand %vm1676, %vm1708
        %vm1741 = vmand %vm1677, %vm1709
        %vm1742 = vmand %vm1678, %vm1710
        %s1743 = sld [smem:[#allocation2 + $0x4]]
        %v1744 = vstv %s1743
        %v1745 = vsel %vm1711, %v1744, %v1422
        %v1746 = vsel %vm1712, %v1744, %v1423
        %v1747 = vsel %vm1713, %v1744, %v1424
        %v1748 = vsel %vm1714, %v1744, %v1425
        %v1749 = vsel %vm1715, %v1744, %v1426
        %v1750 = vsel %vm1716, %v1744, %v1427
        %v1751 = vsel %vm1717, %v1744, %v1428
        %v1752 = vsel %vm1718, %v1744, %v1429
        %v1753 = vsel %vm1719, %v1744, %v1430
        %v1754 = vsel %vm1720, %v1744, %v1431
        %v1755 = vsel %vm1721, %v1744, %v1432
        %v1756 = vsel %vm1722, %v1744, %v1433
        %v1757 = vsel %vm1723, %v1744, %v1434
        %v1758 = vsel %vm1724, %v1744, %v1435
        %v1759 = vsel %vm1725, %v1744, %v1436
        %v1760 = vsel %vm1726, %v1744, %v1437
        %v1761 = vsel %vm1727, %v1744, %v1438
        %v1762 = vsel %vm1728, %v1744, %v1439
        %v1763 = vsel %vm1729, %v1744, %v1440
        %v1764 = vsel %vm1730, %v1744, %v1441
        %v1765 = vsel %vm1731, %v1744, %v1442
        %v1766 = vsel %vm1732, %v1744, %v1443
        %v1767 = vsel %vm1733, %v1744, %v1444
        %v1768 = vsel %vm1734, %v1744, %v1445
        %v1769 = vsel %vm1735, %v1744, %v1446
        %v1770 = vsel %vm1736, %v1744, %v1447
        %v1771 = vsel %vm1737, %v1744, %v1448
        %v1772 = vsel %vm1738, %v1744, %v1449
        %v1773 = vsel %vm1739, %v1744, %v1450
        %v1774 = vsel %vm1740, %v1744, %v1451
        %v1775 = vsel %vm1741, %v1744, %v1452
        %v1776 = vsel %vm1742, %v1744, %v1453
        %v1777 = vsel %vm1647, 1, 0
        %v1778 = vsel %vm1648, 1, 0
        %v1779 = vsel %vm1649, 1, 0
        %v1780 = vsel %vm1650, 1, 0
        %v1781 = vsel %vm1651, 1, 0
        %v1782 = vsel %vm1652, 1, 0
        %v1783 = vsel %vm1653, 1, 0
        %v1784 = vsel %vm1654, 1, 0
        %v1785 = vsel %vm1655, 1, 0
        %v1786 = vsel %vm1656, 1, 0
        %v1787 = vsel %vm1657, 1, 0
        %v1788 = vsel %vm1658, 1, 0
        %v1789 = vsel %vm1659, 1, 0
        %v1790 = vsel %vm1660, 1, 0
        %v1791 = vsel %vm1661, 1, 0
        %v1792 = vsel %vm1662, 1, 0
        %v1793 = vsel %vm1663, 1, 0
        %v1794 = vsel %vm1664, 1, 0
        %v1795 = vsel %vm1665, 1, 0
        %v1796 = vsel %vm1666, 1, 0
        %v1797 = vsel %vm1667, 1, 0
        %v1798 = vsel %vm1668, 1, 0
        %v1799 = vsel %vm1669, 1, 0
        %v1800 = vsel %vm1670, 1, 0
        %v1801 = vsel %vm1671, 1, 0
        %v1802 = vsel %vm1672, 1, 0
        %v1803 = vsel %vm1673, 1, 0
        %v1804 = vsel %vm1674, 1, 0
        %v1805 = vsel %vm1675, 1, 0
        %v1806 = vsel %vm1676, 1, 0
        %v1807 = vsel %vm1677, 1, 0
        %v1808 = vsel %vm1678, 1, 0
        %v1809 = vcvt.s32.f32 %v1777
        %v1810 = vcvt.s32.f32 %v1778
        %v1811 = vcvt.s32.f32 %v1779
        %v1812 = vcvt.s32.f32 %v1780
        %v1813 = vcvt.s32.f32 %v1781
        %v1814 = vcvt.s32.f32 %v1782
        %v1815 = vcvt.s32.f32 %v1783
        %v1816 = vcvt.s32.f32 %v1784
        %v1817 = vcvt.s32.f32 %v1785
        %v1818 = vcvt.s32.f32 %v1786
        %v1819 = vcvt.s32.f32 %v1787
        %v1820 = vcvt.s32.f32 %v1788
        %v1821 = vcvt.s32.f32 %v1789
        %v1822 = vcvt.s32.f32 %v1790
        %v1823 = vcvt.s32.f32 %v1791
        %v1824 = vcvt.s32.f32 %v1792
        %v1825 = vcvt.s32.f32 %v1793
        %v1826 = vcvt.s32.f32 %v1794
        %v1827 = vcvt.s32.f32 %v1795
        %v1828 = vcvt.s32.f32 %v1796
        %v1829 = vcvt.s32.f32 %v1797
        %v1830 = vcvt.s32.f32 %v1798
        %v1831 = vcvt.s32.f32 %v1799
        %v1832 = vcvt.s32.f32 %v1800
        %v1833 = vcvt.s32.f32 %v1801
        %v1834 = vcvt.s32.f32 %v1802
        %v1835 = vcvt.s32.f32 %v1803
        %v1836 = vcvt.s32.f32 %v1804
        %v1837 = vcvt.s32.f32 %v1805
        %v1838 = vcvt.s32.f32 %v1806
        %v1839 = vcvt.s32.f32 %v1807
        %v1840 = vcvt.s32.f32 %v1808
        %v1841 = vpack.c.bf16 %v1811, %v1809
        %v1842 = vpack.c.bf16 %v1812, %v1810
        %v1843 = vpack.c.bf16 %v1815, %v1813
        %v1844 = vpack.c.bf16 %v1816, %v1814
        %v1845 = vpack.c.bf16 %v1819, %v1817
        %v1846 = vpack.c.bf16 %v1820, %v1818
        %v1847 = vpack.c.bf16 %v1823, %v1821
        %v1848 = vpack.c.bf16 %v1824, %v1822
        %v1849 = vpack.c.bf16 %v1827, %v1825
        %v1850 = vpack.c.bf16 %v1828, %v1826
        %v1851 = vpack.c.bf16 %v1831, %v1829
        %v1852 = vpack.c.bf16 %v1832, %v1830
        %v1853 = vpack.c.bf16 %v1835, %v1833
        %v1854 = vpack.c.bf16 %v1836, %v1834
        %v1855 = vpack.c.bf16 %v1839, %v1837
        %v1856 = vpack.c.bf16 %v1840, %v1838
        %1857 = vmatprep.subr.bf16.mxu0 %v761
        %1858 = vmatpush1.bf16.msra.mxu0 %v760
        %1859 = vmatprep.subr.bf16.mxu0 %v763
        %1860 = vmatpush1.bf16.msra.mxu0 %v762
        %1861 = vmatprep.subr.bf16.mxu0 %v765
        %1862 = vmatpush1.bf16.msra.mxu0 %v764
        %1863 = vmatprep.subr.bf16.mxu0 %v767
        %1864 = vmatpush1.bf16.msra.mxu0 %v766
        %1865 = vmatprep.subr.bf16.mxu0 %v769
        %1866 = vmatpush1.bf16.msra.mxu0 %v768
        %1867 = vmatprep.subr.bf16.mxu0 %v771
        %1868 = vmatpush1.bf16.msra.mxu0 %v770
        %1869 = vmatprep.subr.bf16.mxu0 %v773
        %1870 = vmatpush1.bf16.msra.mxu0 %v772
        %1871 = vmatprep.subr.bf16.mxu0 %v775
        %1872 = vmatpush1.bf16.msra.mxu0 %v774
        %1873 = vmatprep.subr.bf16.mxu0 %v777
        %1874 = vmatpush1.bf16.msra.mxu0 %v776
        %1875 = vmatprep.subr.bf16.mxu0 %v779
        %1876 = vmatpush1.bf16.msra.mxu0 %v778
        %1877 = vmatprep.subr.bf16.mxu0 %v781
        %1878 = vmatpush1.bf16.msra.mxu0 %v780
        %1879 = vmatprep.subr.bf16.mxu0 %v783
        %1880 = vmatpush1.bf16.msra.mxu0 %v782
        %1881 = vmatprep.subr.bf16.mxu0 %v785
        %1882 = vmatpush1.bf16.msra.mxu0 %v784
        %1883 = vmatprep.subr.bf16.mxu0 %v787
        %1884 = vmatpush1.bf16.msra.mxu0 %v786
        %1885 = vmatprep.subr.bf16.mxu0 %v789
        %1886 = vmatpush1.bf16.msra.mxu0 %v788
        %1887 = vmatprep.subr.bf16.mxu0 %v791
        %1888 = vmatpush1.bf16.msra.mxu0 %v790
        %1889 = vmatprep.mubr.bf16.mxu0 %v1842
        %1890 = vmatmul.mubr.bf16.gmra.mrb[0].mxu0 %v1841
        %v1891 = vpop.f32.mrb[0].mxu0
        %v1892 = vadd.f32 0.0, %v1891
        %v1893 = vpop.f32.mrb[0].mxu0
        %v1894 = vadd.f32 0.0, %v1893
        %v1895 = vpop.f32.mrb[0].mxu0
        %v1896 = vadd.f32 0.0, %v1895
        %v1897 = vpop.f32.mrb[0].mxu0
        %v1898 = vadd.f32 0.0, %v1897
        %1899 = vmatprep.mubr.bf16.mxu0 %v1844
        %1900 = vmatmul.mubr.bf16.gmra.mrb[0].mxu0 %v1843
        %v1901 = vpop.f32.mrb[0].mxu0
        %v1902 = vadd.f32 0.0, %v1901
        %v1903 = vpop.f32.mrb[0].mxu0
        %v1904 = vadd.f32 0.0, %v1903
        %v1905 = vpop.f32.mrb[0].mxu0
        %v1906 = vadd.f32 0.0, %v1905
        %v1907 = vpop.f32.mrb[0].mxu0
        %v1908 = vadd.f32 0.0, %v1907
        %1909 = vmatprep.mubr.bf16.mxu0 %v1846
        %1910 = vmatmul.mubr.bf16.gmra.mrb[0].mxu0 %v1845
        %v1911 = vpop.f32.mrb[0].mxu0
        %v1912 = vadd.f32 0.0, %v1911
        %v1913 = vpop.f32.mrb[0].mxu0
        %v1914 = vadd.f32 0.0, %v1913
        %v1915 = vpop.f32.mrb[0].mxu0
        %v1916 = vadd.f32 0.0, %v1915
        %v1917 = vpop.f32.mrb[0].mxu0
        %v1918 = vadd.f32 0.0, %v1917
        %1919 = vmatprep.mubr.bf16.mxu0 %v1848
        %1920 = vmatmul.mubr.bf16.gmra.mrb[0].mxu0 %v1847
        %v1921 = vpop.f32.mrb[0].mxu0
        %v1922 = vadd.f32 0.0, %v1921
        %v1923 = vpop.f32.mrb[0].mxu0
        %v1924 = vadd.f32 0.0, %v1923
        %v1925 = vpop.f32.mrb[0].mxu0
        %v1926 = vadd.f32 0.0, %v1925
        %v1927 = vpop.f32.mrb[0].mxu0
        %v1928 = vadd.f32 0.0, %v1927
        %1929 = vmatprep.mubr.bf16.mxu0 %v1850
        %1930 = vmatmul.mubr.bf16.gmra.mrb[0].mxu0 %v1849
        %v1931 = vpop.f32.mrb[0].mxu0
        %v1932 = vadd.f32 0.0, %v1931
        %v1933 = vpop.f32.mrb[0].mxu0
        %v1934 = vadd.f32 0.0, %v1933
        %v1935 = vpop.f32.mrb[0].mxu0
        %v1936 = vadd.f32 0.0, %v1935
        %v1937 = vpop.f32.mrb[0].mxu0
        %v1938 = vadd.f32 0.0, %v1937
        %1939 = vmatprep.mubr.bf16.mxu0 %v1852
        %1940 = vmatmul.mubr.bf16.gmra.mrb[0].mxu0 %v1851
        %v1941 = vpop.f32.mrb[0].mxu0
        %v1942 = vadd.f32 0.0, %v1941
        %v1943 = vpop.f32.mrb[0].mxu0
        %v1944 = vadd.f32 0.0, %v1943
        %v1945 = vpop.f32.mrb[0].mxu0
        %v1946 = vadd.f32 0.0, %v1945
        %v1947 = vpop.f32.mrb[0].mxu0
        %v1948 = vadd.f32 0.0, %v1947
        %1949 = vmatprep.mubr.bf16.mxu0 %v1854
        %1950 = vmatmul.mubr.bf16.gmra.mrb[0].mxu0 %v1853
        %v1951 = vpop.f32.mrb[0].mxu0
        %v1952 = vadd.f32 0.0, %v1951
        %v1953 = vpop.f32.mrb[0].mxu0
        %v1954 = vadd.f32 0.0, %v1953
        %v1955 = vpop.f32.mrb[0].mxu0
        %v1956 = vadd.f32 0.0, %v1955
        %v1957 = vpop.f32.mrb[0].mxu0
        %v1958 = vadd.f32 0.0, %v1957
        %1959 = vmatprep.mubr.bf16.mxu0 %v1856
        %1960 = vmatmul.mubr.bf16.gmra.mrb[0].mxu0 %v1855
        %v1961 = vpop.f32.mrb[0].mxu0
        %v1962 = vadd.f32 0.0, %v1961
        %v1963 = vpop.f32.mrb[0].mxu0
        %v1964 = vadd.f32 0.0, %v1963
        %v1965 = vpop.f32.mrb[0].mxu0
        %v1966 = vadd.f32 0.0, %v1965
        %v1967 = vpop.f32.mrb[0].mxu0
        %v1968 = vadd.f32 0.0, %v1967
        %1969 = vdwg.mxu0
        %vm1970 = vcmp.gt.f32.partialorder %v1892, 0.0
        %vm1971 = vcmp.gt.f32.partialorder %v1894, 0.0
        %vm1972 = vcmp.gt.f32.partialorder %v1896, 0.0
        %vm1973 = vcmp.gt.f32.partialorder %v1898, 0.0
        %vm1974 = vcmp.gt.f32.partialorder %v1902, 0.0
        %vm1975 = vcmp.gt.f32.partialorder %v1904, 0.0
        %vm1976 = vcmp.gt.f32.partialorder %v1906, 0.0
        %vm1977 = vcmp.gt.f32.partialorder %v1908, 0.0
        %vm1978 = vcmp.gt.f32.partialorder %v1912, 0.0
        %vm1979 = vcmp.gt.f32.partialorder %v1914, 0.0
        %vm1980 = vcmp.gt.f32.partialorder %v1916, 0.0
        %vm1981 = vcmp.gt.f32.partialorder %v1918, 0.0
        %vm1982 = vcmp.gt.f32.partialorder %v1922, 0.0
        %vm1983 = vcmp.gt.f32.partialorder %v1924, 0.0
        %vm1984 = vcmp.gt.f32.partialorder %v1926, 0.0
        %vm1985 = vcmp.gt.f32.partialorder %v1928, 0.0
        %vm1986 = vcmp.gt.f32.partialorder %v1932, 0.0
        %vm1987 = vcmp.gt.f32.partialorder %v1934, 0.0
        %vm1988 = vcmp.gt.f32.partialorder %v1936, 0.0
        %vm1989 = vcmp.gt.f32.partialorder %v1938, 0.0
        %vm1990 = vcmp.gt.f32.partialorder %v1942, 0.0
        %vm1991 = vcmp.gt.f32.partialorder %v1944, 0.0
        %vm1992 = vcmp.gt.f32.partialorder %v1946, 0.0
        %vm1993 = vcmp.gt.f32.partialorder %v1948, 0.0
        %vm1994 = vcmp.gt.f32.partialorder %v1952, 0.0
        %vm1995 = vcmp.gt.f32.partialorder %v1954, 0.0
        %vm1996 = vcmp.gt.f32.partialorder %v1956, 0.0
        %vm1997 = vcmp.gt.f32.partialorder %v1958, 0.0
        %vm1998 = vcmp.gt.f32.partialorder %v1962, 0.0
        %vm1999 = vcmp.gt.f32.partialorder %v1964, 0.0
        %vm2000 = vcmp.gt.f32.partialorder %v1966, 0.0
        %vm2001 = vcmp.gt.f32.partialorder %v1968, 0.0
        %vm2002 = vmxor %vm1647, 1
        %vm2003 = vmxor %vm1648, 1
        %vm2004 = vmxor %vm1649, 1
        %vm2005 = vmxor %vm1650, 1
        %vm2006 = vmxor %vm1651, 1
        %vm2007 = vmxor %vm1652, 1
        %vm2008 = vmxor %vm1653, 1
        %vm2009 = vmxor %vm1654, 1
        %vm2010 = vmxor %vm1655, 1
        %vm2011 = vmxor %vm1656, 1
        %vm2012 = vmxor %vm1657, 1
        %vm2013 = vmxor %vm1658, 1
        %vm2014 = vmxor %vm1659, 1
        %vm2015 = vmxor %vm1660, 1
        %vm2016 = vmxor %vm1661, 1
        %vm2017 = vmxor %vm1662, 1
        %vm2018 = vmxor %vm1663, 1
        %vm2019 = vmxor %vm1664, 1
        %vm2020 = vmxor %vm1665, 1
        %vm2021 = vmxor %vm1666, 1
        %vm2022 = vmxor %vm1667, 1
        %vm2023 = vmxor %vm1668, 1
        %vm2024 = vmxor %vm1669, 1
        %vm2025 = vmxor %vm1670, 1
        %vm2026 = vmxor %vm1671, 1
        %vm2027 = vmxor %vm1672, 1
        %vm2028 = vmxor %vm1673, 1
        %vm2029 = vmxor %vm1674, 1
        %vm2030 = vmxor %vm1675, 1
        %vm2031 = vmxor %vm1676, 1
        %vm2032 = vmxor %vm1677, 1
        %vm2033 = vmxor %vm1678, 1
        %vm2034 = vmand %vm1970, %vm2002
        %vm2035 = vmand %vm1971, %vm2003
        %vm2036 = vmand %vm1972, %vm2004
        %vm2037 = vmand %vm1973, %vm2005
        %vm2038 = vmand %vm1974, %vm2006
        %vm2039 = vmand %vm1975, %vm2007
        %vm2040 = vmand %vm1976, %vm2008
        %vm2041 = vmand %vm1977, %vm2009
        %vm2042 = vmand %vm1978, %vm2010
        %vm2043 = vmand %vm1979, %vm2011
        %vm2044 = vmand %vm1980, %vm2012
        %vm2045 = vmand %vm1981, %vm2013
        %vm2046 = vmand %vm1982, %vm2014
        %vm2047 = vmand %vm1983, %vm2015
        %vm2048 = vmand %vm1984, %vm2016
        %vm2049 = vmand %vm1985, %vm2017
        %vm2050 = vmand %vm1986, %vm2018
        %vm2051 = vmand %vm1987, %vm2019
        %vm2052 = vmand %vm1988, %vm2020
        %vm2053 = vmand %vm1989, %vm2021
        %vm2054 = vmand %vm1990, %vm2022
        %vm2055 = vmand %vm1991, %vm2023
        %vm2056 = vmand %vm1992, %vm2024
        %vm2057 = vmand %vm1993, %vm2025
        %vm2058 = vmand %vm1994, %vm2026
        %vm2059 = vmand %vm1995, %vm2027
        %vm2060 = vmand %vm1996, %vm2028
        %vm2061 = vmand %vm1997, %vm2029
        %vm2062 = vmand %vm1998, %vm2030
        %vm2063 = vmand %vm1999, %vm2031
        %vm2064 = vmand %vm2000, %vm2032
        %vm2065 = vmand %vm2001, %vm2033
        %s2066 = sld [smem:[#allocation2 + $0x5]]
        %v2067 = vstv %s2066
        %v2068 = vsel %vm2034, %v2067, %v1745
        %v2069 = vsel %vm2035, %v2067, %v1746
        %v2070 = vsel %vm2036, %v2067, %v1747
        %v2071 = vsel %vm2037, %v2067, %v1748
        %v2072 = vsel %vm2038, %v2067, %v1749
        %v2073 = vsel %vm2039, %v2067, %v1750
        %v2074 = vsel %vm2040, %v2067, %v1751
        %v2075 = vsel %vm2041, %v2067, %v1752
        %v2076 = vsel %vm2042, %v2067, %v1753
        %v2077 = vsel %vm2043, %v2067, %v1754
        %v2078 = vsel %vm2044, %v2067, %v1755
        %v2079 = vsel %vm2045, %v2067, %v1756
        %v2080 = vsel %vm2046, %v2067, %v1757
        %v2081 = vsel %vm2047, %v2067, %v1758
        %v2082 = vsel %vm2048, %v2067, %v1759
        %v2083 = vsel %vm2049, %v2067, %v1760
        %v2084 = vsel %vm2050, %v2067, %v1761
        %v2085 = vsel %vm2051, %v2067, %v1762
        %v2086 = vsel %vm2052, %v2067, %v1763
        %v2087 = vsel %vm2053, %v2067, %v1764
        %v2088 = vsel %vm2054, %v2067, %v1765
        %v2089 = vsel %vm2055, %v2067, %v1766
        %v2090 = vsel %vm2056, %v2067, %v1767
        %v2091 = vsel %vm2057, %v2067, %v1768
        %v2092 = vsel %vm2058, %v2067, %v1769
        %v2093 = vsel %vm2059, %v2067, %v1770
        %v2094 = vsel %vm2060, %v2067, %v1771
        %v2095 = vsel %vm2061, %v2067, %v1772
        %v2096 = vsel %vm2062, %v2067, %v1773
        %v2097 = vsel %vm2063, %v2067, %v1774
        %v2098 = vsel %vm2064, %v2067, %v1775
        %v2099 = vsel %vm2065, %v2067, %v1776
        %v2100 = vsel %vm1970, 1, 0
        %v2101 = vsel %vm1971, 1, 0
        %v2102 = vsel %vm1972, 1, 0
        %v2103 = vsel %vm1973, 1, 0
        %v2104 = vsel %vm1974, 1, 0
        %v2105 = vsel %vm1975, 1, 0
        %v2106 = vsel %vm1976, 1, 0
        %v2107 = vsel %vm1977, 1, 0
        %v2108 = vsel %vm1978, 1, 0
        %v2109 = vsel %vm1979, 1, 0
        %v2110 = vsel %vm1980, 1, 0
        %v2111 = vsel %vm1981, 1, 0
        %v2112 = vsel %vm1982, 1, 0
        %v2113 = vsel %vm1983, 1, 0
        %v2114 = vsel %vm1984, 1, 0
        %v2115 = vsel %vm1985, 1, 0
        %v2116 = vsel %vm1986, 1, 0
        %v2117 = vsel %vm1987, 1, 0
        %v2118 = vsel %vm1988, 1, 0
        %v2119 = vsel %vm1989, 1, 0
        %v2120 = vsel %vm1990, 1, 0
        %v2121 = vsel %vm1991, 1, 0
        %v2122 = vsel %vm1992, 1, 0
        %v2123 = vsel %vm1993, 1, 0
        %v2124 = vsel %vm1994, 1, 0
        %v2125 = vsel %vm1995, 1, 0
        %v2126 = vsel %vm1996, 1, 0
        %v2127 = vsel %vm1997, 1, 0
        %v2128 = vsel %vm1998, 1, 0
        %v2129 = vsel %vm1999, 1, 0
        %v2130 = vsel %vm2000, 1, 0
        %v2131 = vsel %vm2001, 1, 0
        %v2132 = vcvt.s32.f32 %v2100
        %v2133 = vcvt.s32.f32 %v2101
        %v2134 = vcvt.s32.f32 %v2102
        %v2135 = vcvt.s32.f32 %v2103
        %v2136 = vcvt.s32.f32 %v2104
        %v2137 = vcvt.s32.f32 %v2105
        %v2138 = vcvt.s32.f32 %v2106
        %v2139 = vcvt.s32.f32 %v2107
        %v2140 = vcvt.s32.f32 %v2108
        %v2141 = vcvt.s32.f32 %v2109
        %v2142 = vcvt.s32.f32 %v2110
        %v2143 = vcvt.s32.f32 %v2111
        %v2144 = vcvt.s32.f32 %v2112
        %v2145 = vcvt.s32.f32 %v2113
        %v2146 = vcvt.s32.f32 %v2114
        %v2147 = vcvt.s32.f32 %v2115
        %v2148 = vcvt.s32.f32 %v2116
        %v2149 = vcvt.s32.f32 %v2117
        %v2150 = vcvt.s32.f32 %v2118
        %v2151 = vcvt.s32.f32 %v2119
        %v2152 = vcvt.s32.f32 %v2120
        %v2153 = vcvt.s32.f32 %v2121
        %v2154 = vcvt.s32.f32 %v2122
        %v2155 = vcvt.s32.f32 %v2123
        %v2156 = vcvt.s32.f32 %v2124
        %v2157 = vcvt.s32.f32 %v2125
        %v2158 = vcvt.s32.f32 %v2126
        %v2159 = vcvt.s32.f32 %v2127
        %v2160 = vcvt.s32.f32 %v2128
        %v2161 = vcvt.s32.f32 %v2129
        %v2162 = vcvt.s32.f32 %v2130
        %v2163 = vcvt.s32.f32 %v2131
        %v2164 = vpack.c.bf16 %v2134, %v2132
        %v2165 = vpack.c.bf16 %v2135, %v2133
        %v2166 = vpack.c.bf16 %v2138, %v2136
        %v2167 = vpack.c.bf16 %v2139, %v2137
        %v2168 = vpack.c.bf16 %v2142, %v2140
        %v2169 = vpack.c.bf16 %v2143, %v2141
        %v2170 = vpack.c.bf16 %v2146, %v2144
        %v2171 = vpack.c.bf16 %v2147, %v2145
        %v2172 = vpack.c.bf16 %v2150, %v2148
        %v2173 = vpack.c.bf16 %v2151, %v2149
        %v2174 = vpack.c.bf16 %v2154, %v2152
        %v2175 = vpack.c.bf16 %v2155, %v2153
        %v2176 = vpack.c.bf16 %v2158, %v2156
        %v2177 = vpack.c.bf16 %v2159, %v2157
        %v2178 = vpack.c.bf16 %v2162, %v2160
        %v2179 = vpack.c.bf16 %v2163, %v2161
        %2180 = vmatprep.subr.bf16.mxu0 %v761
        %2181 = vmatpush1.bf16.msra.mxu0 %v760
        %2182 = vmatprep.subr.bf16.mxu0 %v763
        %2183 = vmatpush1.bf16.msra.mxu0 %v762
        %2184 = vmatprep.subr.bf16.mxu0 %v765
        %2185 = vmatpush1.bf16.msra.mxu0 %v764
        %2186 = vmatprep.subr.bf16.mxu0 %v767
        %2187 = vmatpush1.bf16.msra.mxu0 %v766
        %2188 = vmatprep.subr.bf16.mxu0 %v769
        %2189 = vmatpush1.bf16.msra.mxu0 %v768
        %2190 = vmatprep.subr.bf16.mxu0 %v771
        %2191 = vmatpush1.bf16.msra.mxu0 %v770
        %2192 = vmatprep.subr.bf16.mxu0 %v773
        %2193 = vmatpush1.bf16.msra.mxu0 %v772
        %2194 = vmatprep.subr.bf16.mxu0 %v775
        %2195 = vmatpush1.bf16.msra.mxu0 %v774
        %2196 = vmatprep.subr.bf16.mxu0 %v777
        %2197 = vmatpush1.bf16.msra.mxu0 %v776
        %2198 = vmatprep.subr.bf16.mxu0 %v779
        %2199 = vmatpush1.bf16.msra.mxu0 %v778
        %2200 = vmatprep.subr.bf16.mxu0 %v781
        %2201 = vmatpush1.bf16.msra.mxu0 %v780
        %2202 = vmatprep.subr.bf16.mxu0 %v783
        %2203 = vmatpush1.bf16.msra.mxu0 %v782
        %2204 = vmatprep.subr.bf16.mxu0 %v785
        %2205 = vmatpush1.bf16.msra.mxu0 %v784
        %2206 = vmatprep.subr.bf16.mxu0 %v787
        %2207 = vmatpush1.bf16.msra.mxu0 %v786
        %2208 = vmatprep.subr.bf16.mxu0 %v789
        %2209 = vmatpush1.bf16.msra.mxu0 %v788
        %2210 = vmatprep.subr.bf16.mxu0 %v791
        %2211 = vmatpush1.bf16.msra.mxu0 %v790
        %2212 = vmatprep.mubr.bf16.mxu0 %v2165
        %2213 = vmatmul.mubr.bf16.gmra.mrb[0].mxu0 %v2164
        %v2214 = vpop.f32.mrb[0].mxu0
        %v2215 = vadd.f32 0.0, %v2214
        %v2216 = vpop.f32.mrb[0].mxu0
        %v2217 = vadd.f32 0.0, %v2216
        %v2218 = vpop.f32.mrb[0].mxu0
        %v2219 = vadd.f32 0.0, %v2218
        %v2220 = vpop.f32.mrb[0].mxu0
        %v2221 = vadd.f32 0.0, %v2220
        %2222 = vmatprep.mubr.bf16.mxu0 %v2167
        %2223 = vmatmul.mubr.bf16.gmra.mrb[0].mxu0 %v2166
        %v2224 = vpop.f32.mrb[0].mxu0
        %v2225 = vadd.f32 0.0, %v2224
        %v2226 = vpop.f32.mrb[0].mxu0
        %v2227 = vadd.f32 0.0, %v2226
        %v2228 = vpop.f32.mrb[0].mxu0
        %v2229 = vadd.f32 0.0, %v2228
        %v2230 = vpop.f32.mrb[0].mxu0
        %v2231 = vadd.f32 0.0, %v2230
        %2232 = vmatprep.mubr.bf16.mxu0 %v2169
        %2233 = vmatmul.mubr.bf16.gmra.mrb[0].mxu0 %v2168
        %v2234 = vpop.f32.mrb[0].mxu0
        %v2235 = vadd.f32 0.0, %v2234
        %v2236 = vpop.f32.mrb[0].mxu0
        %v2237 = vadd.f32 0.0, %v2236
        %v2238 = vpop.f32.mrb[0].mxu0
        %v2239 = vadd.f32 0.0, %v2238
        %v2240 = vpop.f32.mrb[0].mxu0
        %v2241 = vadd.f32 0.0, %v2240
        %2242 = vmatprep.mubr.bf16.mxu0 %v2171
        %2243 = vmatmul.mubr.bf16.gmra.mrb[0].mxu0 %v2170
        %v2244 = vpop.f32.mrb[0].mxu0
        %v2245 = vadd.f32 0.0, %v2244
        %v2246 = vpop.f32.mrb[0].mxu0
        %v2247 = vadd.f32 0.0, %v2246
        %v2248 = vpop.f32.mrb[0].mxu0
        %v2249 = vadd.f32 0.0, %v2248
        %v2250 = vpop.f32.mrb[0].mxu0
        %v2251 = vadd.f32 0.0, %v2250
        %2252 = vmatprep.mubr.bf16.mxu0 %v2173
        %2253 = vmatmul.mubr.bf16.gmra.mrb[0].mxu0 %v2172
        %v2254 = vpop.f32.mrb[0].mxu0
        %v2255 = vadd.f32 0.0, %v2254
        %v2256 = vpop.f32.mrb[0].mxu0
        %v2257 = vadd.f32 0.0, %v2256
        %v2258 = vpop.f32.mrb[0].mxu0
        %v2259 = vadd.f32 0.0, %v2258
        %v2260 = vpop.f32.mrb[0].mxu0
        %v2261 = vadd.f32 0.0, %v2260
        %2262 = vmatprep.mubr.bf16.mxu0 %v2175
        %2263 = vmatmul.mubr.bf16.gmra.mrb[0].mxu0 %v2174
        %v2264 = vpop.f32.mrb[0].mxu0
        %v2265 = vadd.f32 0.0, %v2264
        %v2266 = vpop.f32.mrb[0].mxu0
        %v2267 = vadd.f32 0.0, %v2266
        %v2268 = vpop.f32.mrb[0].mxu0
        %v2269 = vadd.f32 0.0, %v2268
        %v2270 = vpop.f32.mrb[0].mxu0
        %v2271 = vadd.f32 0.0, %v2270
        %2272 = vmatprep.mubr.bf16.mxu0 %v2177
        %2273 = vmatmul.mubr.bf16.gmra.mrb[0].mxu0 %v2176
        %v2274 = vpop.f32.mrb[0].mxu0
        %v2275 = vadd.f32 0.0, %v2274
        %v2276 = vpop.f32.mrb[0].mxu0
        %v2277 = vadd.f32 0.0, %v2276
        %v2278 = vpop.f32.mrb[0].mxu0
        %v2279 = vadd.f32 0.0, %v2278
        %v2280 = vpop.f32.mrb[0].mxu0
        %v2281 = vadd.f32 0.0, %v2280
        %2282 = vmatprep.mubr.bf16.mxu0 %v2179
        %2283 = vmatmul.mubr.bf16.gmra.mrb[0].mxu0 %v2178
        %v2284 = vpop.f32.mrb[0].mxu0
        %v2285 = vadd.f32 0.0, %v2284
        %v2286 = vpop.f32.mrb[0].mxu0
        %v2287 = vadd.f32 0.0, %v2286
        %v2288 = vpop.f32.mrb[0].mxu0
        %v2289 = vadd.f32 0.0, %v2288
        %v2290 = vpop.f32.mrb[0].mxu0
        %v2291 = vadd.f32 0.0, %v2290
        %2292 = vdwg.mxu0
        %vm2293 = vcmp.gt.f32.partialorder %v2215, 0.0
        %vm2294 = vcmp.gt.f32.partialorder %v2217, 0.0
        %vm2295 = vcmp.gt.f32.partialorder %v2219, 0.0
        %vm2296 = vcmp.gt.f32.partialorder %v2221, 0.0
        %vm2297 = vcmp.gt.f32.partialorder %v2225, 0.0
        %vm2298 = vcmp.gt.f32.partialorder %v2227, 0.0
        %vm2299 = vcmp.gt.f32.partialorder %v2229, 0.0
        %vm2300 = vcmp.gt.f32.partialorder %v2231, 0.0
        %vm2301 = vcmp.gt.f32.partialorder %v2235, 0.0
        %vm2302 = vcmp.gt.f32.partialorder %v2237, 0.0
        %vm2303 = vcmp.gt.f32.partialorder %v2239, 0.0
        %vm2304 = vcmp.gt.f32.partialorder %v2241, 0.0
        %vm2305 = vcmp.gt.f32.partialorder %v2245, 0.0
        %vm2306 = vcmp.gt.f32.partialorder %v2247, 0.0
        %vm2307 = vcmp.gt.f32.partialorder %v2249, 0.0
        %vm2308 = vcmp.gt.f32.partialorder %v2251, 0.0
        %vm2309 = vcmp.gt.f32.partialorder %v2255, 0.0
        %vm2310 = vcmp.gt.f32.partialorder %v2257, 0.0
        %vm2311 = vcmp.gt.f32.partialorder %v2259, 0.0
        %vm2312 = vcmp.gt.f32.partialorder %v2261, 0.0
        %vm2313 = vcmp.gt.f32.partialorder %v2265, 0.0
        %vm2314 = vcmp.gt.f32.partialorder %v2267, 0.0
        %vm2315 = vcmp.gt.f32.partialorder %v2269, 0.0
        %vm2316 = vcmp.gt.f32.partialorder %v2271, 0.0
        %vm2317 = vcmp.gt.f32.partialorder %v2275, 0.0
        %vm2318 = vcmp.gt.f32.partialorder %v2277, 0.0
        %vm2319 = vcmp.gt.f32.partialorder %v2279, 0.0
        %vm2320 = vcmp.gt.f32.partialorder %v2281, 0.0
        %vm2321 = vcmp.gt.f32.partialorder %v2285, 0.0
        %vm2322 = vcmp.gt.f32.partialorder %v2287, 0.0
        %vm2323 = vcmp.gt.f32.partialorder %v2289, 0.0
        %vm2324 = vcmp.gt.f32.partialorder %v2291, 0.0
        %vm2325 = vmxor %vm1970, 1
        %vm2326 = vmxor %vm1971, 1
        %vm2327 = vmxor %vm1972, 1
        %vm2328 = vmxor %vm1973, 1
        %vm2329 = vmxor %vm1974, 1
        %vm2330 = vmxor %vm1975, 1
        %vm2331 = vmxor %vm1976, 1
        %vm2332 = vmxor %vm1977, 1
        %vm2333 = vmxor %vm1978, 1
        %vm2334 = vmxor %vm1979, 1
        %vm2335 = vmxor %vm1980, 1
        %vm2336 = vmxor %vm1981, 1
        %vm2337 = vmxor %vm1982, 1
        %vm2338 = vmxor %vm1983, 1
        %vm2339 = vmxor %vm1984, 1
        %vm2340 = vmxor %vm1985, 1
        %vm2341 = vmxor %vm1986, 1
        %vm2342 = vmxor %vm1987, 1
        %vm2343 = vmxor %vm1988, 1
        %vm2344 = vmxor %vm1989, 1
        %vm2345 = vmxor %vm1990, 1
        %vm2346 = vmxor %vm1991, 1
        %vm2347 = vmxor %vm1992, 1
        %vm2348 = vmxor %vm1993, 1
        %vm2349 = vmxor %vm1994, 1
        %vm2350 = vmxor %vm1995, 1
        %vm2351 = vmxor %vm1996, 1
        %vm2352 = vmxor %vm1997, 1
        %vm2353 = vmxor %vm1998, 1
        %vm2354 = vmxor %vm1999, 1
        %vm2355 = vmxor %vm2000, 1
        %vm2356 = vmxor %vm2001, 1
        %vm2357 = vmand %vm2293, %vm2325
        %vm2358 = vmand %vm2294, %vm2326
        %vm2359 = vmand %vm2295, %vm2327
        %vm2360 = vmand %vm2296, %vm2328
        %vm2361 = vmand %vm2297, %vm2329
        %vm2362 = vmand %vm2298, %vm2330
        %vm2363 = vmand %vm2299, %vm2331
        %vm2364 = vmand %vm2300, %vm2332
        %vm2365 = vmand %vm2301, %vm2333
        %vm2366 = vmand %vm2302, %vm2334
        %vm2367 = vmand %vm2303, %vm2335
        %vm2368 = vmand %vm2304, %vm2336
        %vm2369 = vmand %vm2305, %vm2337
        %vm2370 = vmand %vm2306, %vm2338
        %vm2371 = vmand %vm2307, %vm2339
        %vm2372 = vmand %vm2308, %vm2340
        %vm2373 = vmand %vm2309, %vm2341
        %vm2374 = vmand %vm2310, %vm2342
        %vm2375 = vmand %vm2311, %vm2343
        %vm2376 = vmand %vm2312, %vm2344
        %vm2377 = vmand %vm2313, %vm2345
        %vm2378 = vmand %vm2314, %vm2346
        %vm2379 = vmand %vm2315, %vm2347
        %vm2380 = vmand %vm2316, %vm2348
        %vm2381 = vmand %vm2317, %vm2349
        %vm2382 = vmand %vm2318, %vm2350
        %vm2383 = vmand %vm2319, %vm2351
        %vm2384 = vmand %vm2320, %vm2352
        %vm2385 = vmand %vm2321, %vm2353
        %vm2386 = vmand %vm2322, %vm2354
        %vm2387 = vmand %vm2323, %vm2355
        %vm2388 = vmand %vm2324, %vm2356
        %s2389 = sld [smem:[#allocation2 + $0x6]]
        %v2390 = vstv %s2389
        %v2391 = vsel %vm2357, %v2390, %v2068
        %v2392 = vsel %vm2358, %v2390, %v2069
        %v2393 = vsel %vm2359, %v2390, %v2070
        %v2394 = vsel %vm2360, %v2390, %v2071
        %v2395 = vsel %vm2361, %v2390, %v2072
        %v2396 = vsel %vm2362, %v2390, %v2073
        %v2397 = vsel %vm2363, %v2390, %v2074
        %v2398 = vsel %vm2364, %v2390, %v2075
        %v2399 = vsel %vm2365, %v2390, %v2076
        %v2400 = vsel %vm2366, %v2390, %v2077
        %v2401 = vsel %vm2367, %v2390, %v2078
        %v2402 = vsel %vm2368, %v2390, %v2079
        %v2403 = vsel %vm2369, %v2390, %v2080
        %v2404 = vsel %vm2370, %v2390, %v2081
        %v2405 = vsel %vm2371, %v2390, %v2082
        %v2406 = vsel %vm2372, %v2390, %v2083
        %v2407 = vsel %vm2373, %v2390, %v2084
        %v2408 = vsel %vm2374, %v2390, %v2085
        %v2409 = vsel %vm2375, %v2390, %v2086
        %v2410 = vsel %vm2376, %v2390, %v2087
        %v2411 = vsel %vm2377, %v2390, %v2088
        %v2412 = vsel %vm2378, %v2390, %v2089
        %v2413 = vsel %vm2379, %v2390, %v2090
        %v2414 = vsel %vm2380, %v2390, %v2091
        %v2415 = vsel %vm2381, %v2390, %v2092
        %v2416 = vsel %vm2382, %v2390, %v2093
        %v2417 = vsel %vm2383, %v2390, %v2094
        %v2418 = vsel %vm2384, %v2390, %v2095
        %v2419 = vsel %vm2385, %v2390, %v2096
        %v2420 = vsel %vm2386, %v2390, %v2097
        %v2421 = vsel %vm2387, %v2390, %v2098
        %v2422 = vsel %vm2388, %v2390, %v2099
        %v2423 = vsel %vm2293, 1, 0
        %v2424 = vsel %vm2294, 1, 0
        %v2425 = vsel %vm2295, 1, 0
        %v2426 = vsel %vm2296, 1, 0
        %v2427 = vsel %vm2297, 1, 0
        %v2428 = vsel %vm2298, 1, 0
        %v2429 = vsel %vm2299, 1, 0
        %v2430 = vsel %vm2300, 1, 0
        %v2431 = vsel %vm2301, 1, 0
        %v2432 = vsel %vm2302, 1, 0
        %v2433 = vsel %vm2303, 1, 0
        %v2434 = vsel %vm2304, 1, 0
        %v2435 = vsel %vm2305, 1, 0
        %v2436 = vsel %vm2306, 1, 0
        %v2437 = vsel %vm2307, 1, 0
        %v2438 = vsel %vm2308, 1, 0
        %v2439 = vsel %vm2309, 1, 0
        %v2440 = vsel %vm2310, 1, 0
        %v2441 = vsel %vm2311, 1, 0
        %v2442 = vsel %vm2312, 1, 0
        %v2443 = vsel %vm2313, 1, 0
        %v2444 = vsel %vm2314, 1, 0
        %v2445 = vsel %vm2315, 1, 0
        %v2446 = vsel %vm2316, 1, 0
        %v2447 = vsel %vm2317, 1, 0
        %v2448 = vsel %vm2318, 1, 0
        %v2449 = vsel %vm2319, 1, 0
        %v2450 = vsel %vm2320, 1, 0
        %v2451 = vsel %vm2321, 1, 0
        %v2452 = vsel %vm2322, 1, 0
        %v2453 = vsel %vm2323, 1, 0
        %v2454 = vsel %vm2324, 1, 0
        %v2455 = vcvt.s32.f32 %v2423
        %v2456 = vcvt.s32.f32 %v2424
        %v2457 = vcvt.s32.f32 %v2425
        %v2458 = vcvt.s32.f32 %v2426
        %v2459 = vcvt.s32.f32 %v2427
        %v2460 = vcvt.s32.f32 %v2428
        %v2461 = vcvt.s32.f32 %v2429
        %v2462 = vcvt.s32.f32 %v2430
        %v2463 = vcvt.s32.f32 %v2431
        %v2464 = vcvt.s32.f32 %v2432
        %v2465 = vcvt.s32.f32 %v2433
        %v2466 = vcvt.s32.f32 %v2434
        %v2467 = vcvt.s32.f32 %v2435
        %v2468 = vcvt.s32.f32 %v2436
        %v2469 = vcvt.s32.f32 %v2437
        %v2470 = vcvt.s32.f32 %v2438
        %v2471 = vcvt.s32.f32 %v2439
        %v2472 = vcvt.s32.f32 %v2440
        %v2473 = vcvt.s32.f32 %v2441
        %v2474 = vcvt.s32.f32 %v2442
        %v2475 = vcvt.s32.f32 %v2443
        %v2476 = vcvt.s32.f32 %v2444
        %v2477 = vcvt.s32.f32 %v2445
        %v2478 = vcvt.s32.f32 %v2446
        %v2479 = vcvt.s32.f32 %v2447
        %v2480 = vcvt.s32.f32 %v2448
        %v2481 = vcvt.s32.f32 %v2449
        %v2482 = vcvt.s32.f32 %v2450
        %v2483 = vcvt.s32.f32 %v2451
        %v2484 = vcvt.s32.f32 %v2452
        %v2485 = vcvt.s32.f32 %v2453
        %v2486 = vcvt.s32.f32 %v2454
        %v2487 = vpack.c.bf16 %v2457, %v2455
        %v2488 = vpack.c.bf16 %v2458, %v2456
        %v2489 = vpack.c.bf16 %v2461, %v2459
        %v2490 = vpack.c.bf16 %v2462, %v2460
        %v2491 = vpack.c.bf16 %v2465, %v2463
        %v2492 = vpack.c.bf16 %v2466, %v2464
        %v2493 = vpack.c.bf16 %v2469, %v2467
        %v2494 = vpack.c.bf16 %v2470, %v2468
        %v2495 = vpack.c.bf16 %v2473, %v2471
        %v2496 = vpack.c.bf16 %v2474, %v2472
        %v2497 = vpack.c.bf16 %v2477, %v2475
        %v2498 = vpack.c.bf16 %v2478, %v2476
        %v2499 = vpack.c.bf16 %v2481, %v2479
        %v2500 = vpack.c.bf16 %v2482, %v2480
        %v2501 = vpack.c.bf16 %v2485, %v2483
        %v2502 = vpack.c.bf16 %v2486, %v2484
        %2503 = vmatprep.subr.bf16.mxu0 %v761
        %2504 = vmatpush1.bf16.msra.mxu0 %v760
        %2505 = vmatprep.subr.bf16.mxu0 %v763
        %2506 = vmatpush1.bf16.msra.mxu0 %v762
        %2507 = vmatprep.subr.bf16.mxu0 %v765
        %2508 = vmatpush1.bf16.msra.mxu0 %v764
        %2509 = vmatprep.subr.bf16.mxu0 %v767
        %2510 = vmatpush1.bf16.msra.mxu0 %v766
        %2511 = vmatprep.subr.bf16.mxu0 %v769
        %2512 = vmatpush1.bf16.msra.mxu0 %v768
        %2513 = vmatprep.subr.bf16.mxu0 %v771
        %2514 = vmatpush1.bf16.msra.mxu0 %v770
        %2515 = vmatprep.subr.bf16.mxu0 %v773
        %2516 = vmatpush1.bf16.msra.mxu0 %v772
        %2517 = vmatprep.subr.bf16.mxu0 %v775
        %2518 = vmatpush1.bf16.msra.mxu0 %v774
        %2519 = vmatprep.subr.bf16.mxu0 %v777
        %2520 = vmatpush1.bf16.msra.mxu0 %v776
        %2521 = vmatprep.subr.bf16.mxu0 %v779
        %2522 = vmatpush1.bf16.msra.mxu0 %v778
        %2523 = vmatprep.subr.bf16.mxu0 %v781
        %2524 = vmatpush1.bf16.msra.mxu0 %v780
        %2525 = vmatprep.subr.bf16.mxu0 %v783
        %2526 = vmatpush1.bf16.msra.mxu0 %v782
        %2527 = vmatprep.subr.bf16.mxu0 %v785
        %2528 = vmatpush1.bf16.msra.mxu0 %v784
        %2529 = vmatprep.subr.bf16.mxu0 %v787
        %2530 = vmatpush1.bf16.msra.mxu0 %v786
        %2531 = vmatprep.subr.bf16.mxu0 %v789
        %2532 = vmatpush1.bf16.msra.mxu0 %v788
        %2533 = vmatprep.subr.bf16.mxu0 %v791
        %2534 = vmatpush1.bf16.msra.mxu0 %v790
        %2535 = vmatprep.mubr.bf16.mxu0 %v2488
        %2536 = vmatmul.mubr.bf16.gmra.mrb[0].mxu0 %v2487
        %v2537 = vpop.f32.mrb[0].mxu0
        %v2538 = vadd.f32 0.0, %v2537
        %v2539 = vpop.f32.mrb[0].mxu0
        %v2540 = vadd.f32 0.0, %v2539
        %v2541 = vpop.f32.mrb[0].mxu0
        %v2542 = vadd.f32 0.0, %v2541
        %v2543 = vpop.f32.mrb[0].mxu0
        %v2544 = vadd.f32 0.0, %v2543
        %2545 = vmatprep.mubr.bf16.mxu0 %v2490
        %2546 = vmatmul.mubr.bf16.gmra.mrb[0].mxu0 %v2489
        %v2547 = vpop.f32.mrb[0].mxu0
        %v2548 = vadd.f32 0.0, %v2547
        %v2549 = vpop.f32.mrb[0].mxu0
        %v2550 = vadd.f32 0.0, %v2549
        %v2551 = vpop.f32.mrb[0].mxu0
        %v2552 = vadd.f32 0.0, %v2551
        %v2553 = vpop.f32.mrb[0].mxu0
        %v2554 = vadd.f32 0.0, %v2553
        %2555 = vmatprep.mubr.bf16.mxu0 %v2492
        %2556 = vmatmul.mubr.bf16.gmra.mrb[0].mxu0 %v2491
        %v2557 = vpop.f32.mrb[0].mxu0
        %v2558 = vadd.f32 0.0, %v2557
        %v2559 = vpop.f32.mrb[0].mxu0
        %v2560 = vadd.f32 0.0, %v2559
        %v2561 = vpop.f32.mrb[0].mxu0
        %v2562 = vadd.f32 0.0, %v2561
        %v2563 = vpop.f32.mrb[0].mxu0
        %v2564 = vadd.f32 0.0, %v2563
        %2565 = vmatprep.mubr.bf16.mxu0 %v2494
        %2566 = vmatmul.mubr.bf16.gmra.mrb[0].mxu0 %v2493
        %v2567 = vpop.f32.mrb[0].mxu0
        %v2568 = vadd.f32 0.0, %v2567
        %v2569 = vpop.f32.mrb[0].mxu0
        %v2570 = vadd.f32 0.0, %v2569
        %v2571 = vpop.f32.mrb[0].mxu0
        %v2572 = vadd.f32 0.0, %v2571
        %v2573 = vpop.f32.mrb[0].mxu0
        %v2574 = vadd.f32 0.0, %v2573
        %2575 = vmatprep.mubr.bf16.mxu0 %v2496
        %2576 = vmatmul.mubr.bf16.gmra.mrb[0].mxu0 %v2495
        %v2577 = vpop.f32.mrb[0].mxu0
        %v2578 = vadd.f32 0.0, %v2577
        %v2579 = vpop.f32.mrb[0].mxu0
        %v2580 = vadd.f32 0.0, %v2579
        %v2581 = vpop.f32.mrb[0].mxu0
        %v2582 = vadd.f32 0.0, %v2581
        %v2583 = vpop.f32.mrb[0].mxu0
        %v2584 = vadd.f32 0.0, %v2583
        %2585 = vmatprep.mubr.bf16.mxu0 %v2498
        %2586 = vmatmul.mubr.bf16.gmra.mrb[0].mxu0 %v2497
        %v2587 = vpop.f32.mrb[0].mxu0
        %v2588 = vadd.f32 0.0, %v2587
        %v2589 = vpop.f32.mrb[0].mxu0
        %v2590 = vadd.f32 0.0, %v2589
        %v2591 = vpop.f32.mrb[0].mxu0
        %v2592 = vadd.f32 0.0, %v2591
        %v2593 = vpop.f32.mrb[0].mxu0
        %v2594 = vadd.f32 0.0, %v2593
        %2595 = vmatprep.mubr.bf16.mxu0 %v2500
        %2596 = vmatmul.mubr.bf16.gmra.mrb[0].mxu0 %v2499
        %v2597 = vpop.f32.mrb[0].mxu0
        %v2598 = vadd.f32 0.0, %v2597
        %v2599 = vpop.f32.mrb[0].mxu0
        %v2600 = vadd.f32 0.0, %v2599
        %v2601 = vpop.f32.mrb[0].mxu0
        %v2602 = vadd.f32 0.0, %v2601
        %v2603 = vpop.f32.mrb[0].mxu0
        %v2604 = vadd.f32 0.0, %v2603
        %2605 = vmatprep.mubr.bf16.mxu0 %v2502
        %2606 = vmatmul.mubr.bf16.gmra.mrb[0].mxu0 %v2501
        %v2607 = vpop.f32.mrb[0].mxu0
        %v2608 = vadd.f32 0.0, %v2607
        %v2609 = vpop.f32.mrb[0].mxu0
        %v2610 = vadd.f32 0.0, %v2609
        %v2611 = vpop.f32.mrb[0].mxu0
        %v2612 = vadd.f32 0.0, %v2611
        %v2613 = vpop.f32.mrb[0].mxu0
        %v2614 = vadd.f32 0.0, %v2613
        %2615 = vdwg.mxu0
        %vm2616 = vcmp.gt.f32.partialorder %v2538, 0.0
        %vm2617 = vcmp.gt.f32.partialorder %v2540, 0.0
        %vm2618 = vcmp.gt.f32.partialorder %v2542, 0.0
        %vm2619 = vcmp.gt.f32.partialorder %v2544, 0.0
        %vm2620 = vcmp.gt.f32.partialorder %v2548, 0.0
        %vm2621 = vcmp.gt.f32.partialorder %v2550, 0.0
        %vm2622 = vcmp.gt.f32.partialorder %v2552, 0.0
        %vm2623 = vcmp.gt.f32.partialorder %v2554, 0.0
        %vm2624 = vcmp.gt.f32.partialorder %v2558, 0.0
        %vm2625 = vcmp.gt.f32.partialorder %v2560, 0.0
        %vm2626 = vcmp.gt.f32.partialorder %v2562, 0.0
        %vm2627 = vcmp.gt.f32.partialorder %v2564, 0.0
        %vm2628 = vcmp.gt.f32.partialorder %v2568, 0.0
        %vm2629 = vcmp.gt.f32.partialorder %v2570, 0.0
        %vm2630 = vcmp.gt.f32.partialorder %v2572, 0.0
        %vm2631 = vcmp.gt.f32.partialorder %v2574, 0.0
        %vm2632 = vcmp.gt.f32.partialorder %v2578, 0.0
        %vm2633 = vcmp.gt.f32.partialorder %v2580, 0.0
        %vm2634 = vcmp.gt.f32.partialorder %v2582, 0.0
        %vm2635 = vcmp.gt.f32.partialorder %v2584, 0.0
        %vm2636 = vcmp.gt.f32.partialorder %v2588, 0.0
        %vm2637 = vcmp.gt.f32.partialorder %v2590, 0.0
        %vm2638 = vcmp.gt.f32.partialorder %v2592, 0.0
        %vm2639 = vcmp.gt.f32.partialorder %v2594, 0.0
        %vm2640 = vcmp.gt.f32.partialorder %v2598, 0.0
        %vm2641 = vcmp.gt.f32.partialorder %v2600, 0.0
        %vm2642 = vcmp.gt.f32.partialorder %v2602, 0.0
        %vm2643 = vcmp.gt.f32.partialorder %v2604, 0.0
        %vm2644 = vcmp.gt.f32.partialorder %v2608, 0.0
        %vm2645 = vcmp.gt.f32.partialorder %v2610, 0.0
        %vm2646 = vcmp.gt.f32.partialorder %v2612, 0.0
        %vm2647 = vcmp.gt.f32.partialorder %v2614, 0.0
        %vm2648 = vmxor %vm2293, 1
        %vm2649 = vmxor %vm2294, 1
        %vm2650 = vmxor %vm2295, 1
        %vm2651 = vmxor %vm2296, 1
        %vm2652 = vmxor %vm2297, 1
        %vm2653 = vmxor %vm2298, 1
        %vm2654 = vmxor %vm2299, 1
        %vm2655 = vmxor %vm2300, 1
        %vm2656 = vmxor %vm2301, 1
        %vm2657 = vmxor %vm2302, 1
        %vm2658 = vmxor %vm2303, 1
        %vm2659 = vmxor %vm2304, 1
        %vm2660 = vmxor %vm2305, 1
        %vm2661 = vmxor %vm2306, 1
        %vm2662 = vmxor %vm2307, 1
        %vm2663 = vmxor %vm2308, 1
        %vm2664 = vmxor %vm2309, 1
        %vm2665 = vmxor %vm2310, 1
        %vm2666 = vmxor %vm2311, 1
        %vm2667 = vmxor %vm2312, 1
        %vm2668 = vmxor %vm2313, 1
        %vm2669 = vmxor %vm2314, 1
        %vm2670 = vmxor %vm2315, 1
        %vm2671 = vmxor %vm2316, 1
        %vm2672 = vmxor %vm2317, 1
        %vm2673 = vmxor %vm2318, 1
        %vm2674 = vmxor %vm2319, 1
        %vm2675 = vmxor %vm2320, 1
        %vm2676 = vmxor %vm2321, 1
        %vm2677 = vmxor %vm2322, 1
        %vm2678 = vmxor %vm2323, 1
        %vm2679 = vmxor %vm2324, 1
        %vm2680 = vmand %vm2616, %vm2648
        %vm2681 = vmand %vm2617, %vm2649
        %vm2682 = vmand %vm2618, %vm2650
        %vm2683 = vmand %vm2619, %vm2651
        %vm2684 = vmand %vm2620, %vm2652
        %vm2685 = vmand %vm2621, %vm2653
        %vm2686 = vmand %vm2622, %vm2654
        %vm2687 = vmand %vm2623, %vm2655
        %vm2688 = vmand %vm2624, %vm2656
        %vm2689 = vmand %vm2625, %vm2657
        %vm2690 = vmand %vm2626, %vm2658
        %vm2691 = vmand %vm2627, %vm2659
        %vm2692 = vmand %vm2628, %vm2660
        %vm2693 = vmand %vm2629, %vm2661
        %vm2694 = vmand %vm2630, %vm2662
        %vm2695 = vmand %vm2631, %vm2663
        %vm2696 = vmand %vm2632, %vm2664
        %vm2697 = vmand %vm2633, %vm2665
        %vm2698 = vmand %vm2634, %vm2666
        %vm2699 = vmand %vm2635, %vm2667
        %vm2700 = vmand %vm2636, %vm2668
        %vm2701 = vmand %vm2637, %vm2669
        %vm2702 = vmand %vm2638, %vm2670
        %vm2703 = vmand %vm2639, %vm2671
        %vm2704 = vmand %vm2640, %vm2672
        %vm2705 = vmand %vm2641, %vm2673
        %vm2706 = vmand %vm2642, %vm2674
        %vm2707 = vmand %vm2643, %vm2675
        %vm2708 = vmand %vm2644, %vm2676
        %vm2709 = vmand %vm2645, %vm2677
        %vm2710 = vmand %vm2646, %vm2678
        %vm2711 = vmand %vm2647, %vm2679
        %s2712 = sld [smem:[#allocation2 + $0x7]]
        %v2713 = vstv %s2712
        %v2714 = vsel %vm2680, %v2713, %v2391
        %v2715 = vsel %vm2681, %v2713, %v2392
        %v2716 = vsel %vm2682, %v2713, %v2393
        %v2717 = vsel %vm2683, %v2713, %v2394
        %v2718 = vsel %vm2684, %v2713, %v2395
        %v2719 = vsel %vm2685, %v2713, %v2396
        %v2720 = vsel %vm2686, %v2713, %v2397
        %v2721 = vsel %vm2687, %v2713, %v2398
        %v2722 = vsel %vm2688, %v2713, %v2399
        %v2723 = vsel %vm2689, %v2713, %v2400
        %v2724 = vsel %vm2690, %v2713, %v2401
        %v2725 = vsel %vm2691, %v2713, %v2402
        %v2726 = vsel %vm2692, %v2713, %v2403
        %v2727 = vsel %vm2693, %v2713, %v2404
        %v2728 = vsel %vm2694, %v2713, %v2405
        %v2729 = vsel %vm2695, %v2713, %v2406
        %v2730 = vsel %vm2696, %v2713, %v2407
        %v2731 = vsel %vm2697, %v2713, %v2408
        %v2732 = vsel %vm2698, %v2713, %v2409
        %v2733 = vsel %vm2699, %v2713, %v2410
        %v2734 = vsel %vm2700, %v2713, %v2411
        %v2735 = vsel %vm2701, %v2713, %v2412
        %v2736 = vsel %vm2702, %v2713, %v2413
        %v2737 = vsel %vm2703, %v2713, %v2414
        %v2738 = vsel %vm2704, %v2713, %v2415
        %v2739 = vsel %vm2705, %v2713, %v2416
        %v2740 = vsel %vm2706, %v2713, %v2417
        %v2741 = vsel %vm2707, %v2713, %v2418
        %v2742 = vsel %vm2708, %v2713, %v2419
        %v2743 = vsel %vm2709, %v2713, %v2420
        %v2744 = vsel %vm2710, %v2713, %v2421
        %v2745 = vsel %vm2711, %v2713, %v2422
        %2746 = vst [vmem:[%s148] sm:$0xff] %v2714
        %2747 = vst [vmem:[%s148 + $0x8] sm:$0xff] %v2715
        %2748 = vst [vmem:[%s148 + $0x10] sm:$0xff] %v2716
        %2749 = vst [vmem:[%s148 + $0x18] sm:$0xff] %v2717
        %2750 = vst [vmem:[%s148 + $0x20] sm:$0xff] %v2718
        %2751 = vst [vmem:[%s148 + $0x28] sm:$0xff] %v2719
        %2752 = vst [vmem:[%s148 + $0x30] sm:$0xff] %v2720
        %2753 = vst [vmem:[%s148 + $0x38] sm:$0xff] %v2721
        %2754 = vst [vmem:[%s148 + $0x40] sm:$0xff] %v2722
        %2755 = vst [vmem:[%s148 + $0x48] sm:$0xff] %v2723
        %2756 = vst [vmem:[%s148 + $0x50] sm:$0xff] %v2724
        %2757 = vst [vmem:[%s148 + $0x58] sm:$0xff] %v2725
        %2758 = vst [vmem:[%s148 + $0x60] sm:$0xff] %v2726
        %2759 = vst [vmem:[%s148 + $0x68] sm:$0xff] %v2727
        %2760 = vst [vmem:[%s148 + $0x70] sm:$0xff] %v2728
        %2761 = vst [vmem:[%s148 + $0x78] sm:$0xff] %v2729
        %2762 = vst [vmem:[%s148 + $0x80] sm:$0xff] %v2730
        %2763 = vst [vmem:[%s148 + $0x88] sm:$0xff] %v2731
        %2764 = vst [vmem:[%s148 + $0x90] sm:$0xff] %v2732
        %2765 = vst [vmem:[%s148 + $0x98] sm:$0xff] %v2733
        %2766 = vst [vmem:[%s148 + $0xa0] sm:$0xff] %v2734
        %2767 = vst [vmem:[%s148 + $0xa8] sm:$0xff] %v2735
        %2768 = vst [vmem:[%s148 + $0xb0] sm:$0xff] %v2736
        %2769 = vst [vmem:[%s148 + $0xb8] sm:$0xff] %v2737
        %2770 = vst [vmem:[%s148 + $0xc0] sm:$0xff] %v2738
        %2771 = vst [vmem:[%s148 + $0xc8] sm:$0xff] %v2739
        %2772 = vst [vmem:[%s148 + $0xd0] sm:$0xff] %v2740
        %2773 = vst [vmem:[%s148 + $0xd8] sm:$0xff] %v2741
        %2774 = vst [vmem:[%s148 + $0xe0] sm:$0xff] %v2742
        %2775 = vst [vmem:[%s148 + $0xe8] sm:$0xff] %v2743
        %2776 = vst [vmem:[%s148 + $0xf0] sm:$0xff] %v2744
        %2777 = vst [vmem:[%s148 + $0xf8] sm:$0xff] %v2745
        %s2778 = sand.u32 %s68, 1
        %s2779 = scalar_lea.sflag [#allocation4], %s2778
        %s2780 = sand.u32 %s68, 1
        %s2781 = smul.addr %s2780, 256
        %s2782 = scalar_lea.vmem [#allocation7], %s2781
        // Predicated region
        $region37: #{tpu_custom_call.1} parent=27 // pred_check
          %p2783 = pneg %p78
        $region38: #{tpu_custom_call.1} parent=27 // pred_check_branch
          %2785 = sbr.rel (%p2783) target = $region40
        $region39: #{tpu_custom_call.1} parent=27 // pred_region
          %s2786 = smul.u32 16, %s18
          %s2788 = ssub.s32 4096, 4096
          %2789 = vsyncadd %s2779, %s2788
          %s2790 = smul.addr %s2786, 2
          %s2791 = smul.addr %s2790, 128
          %s2792 = scalar_lea.hbm %s2, %s2791
          %s2793 = sshll.u32 %s2782, 4
          %s2794 = int_to_ptr.vmem [resolvable:$true] %s2793
          %2799 = dma.vmem_to_hbm [thread:$0]  %s2794, 4096, %s2792, %s2779, 256, 256, 16
        $region40: #{tpu_custom_call.1} parent=27 // pred_fallthru
          _
      $region28: #{tpu_custom_call.1} parent=5 // pred_fallthru
        _
      %p2800 = scmp.le.s32.totalorder 2, %s13
      // Predicated region
      $region41: #{tpu_custom_call.1} parent=5 // pred_check
        %p2801 = pneg %p2800
      $region42: #{tpu_custom_call.1} parent=5 // pred_check_branch
        %2803 = sbr.rel (%p2801) target = $region44
      $region43: #{tpu_custom_call.1} parent=5 // pred_region
        %s2804 = ssub.s32 %s13, 2
        // Predicated region
        $region45: #{tpu_custom_call.1} parent=43 // pred_check
          %p2805 = pneg %p84
        $region46: #{tpu_custom_call.1} parent=43 // pred_check_branch
          %2807 = sbr.rel (%p2805) target = $region48
        $region47: #{tpu_custom_call.1} parent=43 // pred_region
          %s2808 = sand.u32 %s69, 1
          %s2809 = scalar_lea.sflag [#allocation4], %s2808
          %s2810 = sand.u32 %s69, 1
          %s2811 = smul.addr %s2810, 256
          %s2812 = scalar_lea.vmem [#allocation7], %s2811
          %2813 = dma.done %s2809, 4096
        $region48: #{tpu_custom_call.1} parent=43 // pred_fallthru
          _
      $region44: #{tpu_custom_call.1} parent=5 // pred_fallthru
        _
    $region6: #{tpu_custom_call.1} parent=1 // loop_footer
      %s17 = sadd.s32 1, %s13
    $region7: #{tpu_custom_call.1} parent=1 // loop_footer_branch
      %12 = sbr.rel target = $region3
    $region8: #{tpu_custom_call.1} parent=1 // loop_exit
      _
    %2814 = vsyncpa [#allocation3], 1
    %s2815 = scalar_lea.sflag [#allocation3], 1
    %2816 = vsyncpa %s2815, 1
    %2817 = vsyncpa [#allocation4], 1
    %s2818 = scalar_lea.sflag [#allocation4], 1
    %2819 = vsyncpa %s2818, 1
    %2820 = vsyncpa [#allocation5], 1
    %s2821 = scalar_lea.sflag [#allocation5], 1
    %2822 = vsyncpa %s2821, 1

</llo_original>
